<compile_context>
chip_gen: v7x
topology: tpu7x:2x2x1
jax: 0.10.0
libtpu: 0.0.40
codegen_flags: <defaults>
</compile_context>

<pallas_src>
import math

import jax
import jax.numpy as jnp
from jax.experimental import pallas as pl
from jax.experimental.pallas import tpu as pltpu  # noqa: F401  (TPU backend)

# Small, module-consistent shapes.
B, S, D, H, DFF = 2, 8, 32, 4, 64
DEPTH = D // H
BS = B * S
EPS = 1e-6

# Packing assumptions used below (hold for this configuration).
assert 2 * DFF == 4 * D          # [w1 | w2^T] fits a (D, 4D) slab
assert DFF + D <= 4 * D          # [b1 | b2 | pad] fits a (1, 4D) row


def encoder_layer_kernel(x_ref, mask_bias_ref, w_qkvd_ref, w_ffn_ref,
                         b_ref, ln_ref, out_ref):
    x = x_ref[...]                                   # (BS, D)
    mask_bias = mask_bias_ref[...]                   # (BS, BS)
    w_qkvd = w_qkvd_ref[...]                         # (D, 4D)  [wq|wk|wv|wd]
    w_ffn = w_ffn_ref[...]                           # (D, 2*DFF) [w1|w2^T]
    b = b_ref[...]                                   # (2, 4D)
    ln = ln_ref[...]                                 # (4, D)

    ln1_g, ln1_b = ln[0:1, :], ln[1:2, :]
    ln2_g, ln2_b = ln[2:3, :], ln[3:4, :]

    # ---- LayerNorm 1 (pre-attention) ----
    mu = jnp.mean(x, axis=-1, keepdims=True)
    var = jnp.mean((x - mu) ** 2, axis=-1, keepdims=True)
    normed = (x - mu) * jax.lax.rsqrt(var + EPS) * ln1_g + ln1_b

    # ---- fused Q|K|V projection: one (BS,D)@(D,3D) matmul ----
    qkv = jnp.dot(normed, w_qkvd[:, :3 * D],
                  preferred_element_type=jnp.float32) + b[0:1, :3 * D]  # (BS,3D)

    # ---- scaled dot-product attention over the joint B*S sequence ----
    # mask_bias already holds -1e4 * (module mask OR cross-batch); masked
    # entries underflow to exactly 0 after f32 exp, so this equals independent
    # per-sequence attention.  Heads are statically unrolled; per-head views
    # are static lane slices of the fused qkv result (2-D intermediates only).
    scale = 1.0 / math.sqrt(DEPTH)
    ctx_cols = []
    for h in range(H):
        qh = qkv[:, h * DEPTH:(h + 1) * DEPTH]                     # (BS, DEPTH)
        kh = qkv[:, D + h * DEPTH:D + (h + 1) * DEPTH]
        vh = qkv[:, 2 * D + h * DEPTH:2 * D + (h + 1) * DEPTH]
        logits = jax.lax.dot_general(
            qh, kh, (((1,), (1,)), ((), ())),
            preferred_element_type=jnp.float32) * scale + mask_bias  # (BS, BS)
        w = jax.nn.softmax(logits, axis=-1)
        ctx_cols.append(jnp.dot(w, vh, preferred_element_type=jnp.float32))
    ctx = jnp.concatenate(ctx_cols, axis=-1)                        # (BS, D)

    # ---- output projection: single K=D matmul against wd ----
    attn_out = jnp.dot(ctx, w_qkvd[:, 3 * D:],
                       preferred_element_type=jnp.float32) + b[0:1, 3 * D:]
    out1 = x + attn_out                              # dropout1 = identity (eval)

    # ---- LayerNorm 2 + point-wise FFN + residual (dropout2 = identity) ----
    mu2 = jnp.mean(out1, axis=-1, keepdims=True)
    var2 = jnp.mean((out1 - mu2) ** 2, axis=-1, keepdims=True)
    out2n = (out1 - mu2) * jax.lax.rsqrt(var2 + EPS) * ln2_g + ln2_b
    hdn = jnp.maximum(
        jnp.dot(out2n, w_ffn[:, :DFF], preferred_element_type=jnp.float32)
        + b[1:2, :DFF], 0.0)                                         # (BS, DFF)
    ffn = jax.lax.dot_general(
        hdn, w_ffn[:, DFF:], (((1,), (1,)), ((), ())),               # w2^T contraction
        preferred_element_type=jnp.float32) + b[1:2, DFF:DFF + D]
    final = out1 + ffn

    # ---- single lane-dense packed output: [out | k | v] = (BS, 3D) ----
    out_ref[...] = jnp.concatenate([final, qkv[:, D:]], axis=-1)


def _cost_estimate():
    macs = (BS * D * 3 * D                 # fused q|k|v projection
            + 2 * H * BS * BS * DEPTH      # logits + weights @ v
            + BS * D * D                   # dense (head-merged) projection
            + 2 * BS * D * DFF)            # two FFN matmuls
    in_elems = (BS * D + BS * BS + D * 4 * D + D * 2 * DFF + 2 * 4 * D + 4 * D)
    out_elems = BS * 3 * D
    return pl.CostEstimate(
        flops=2 * macs,
        transcendentals=H * BS * BS + 2 * BS,   # softmax exps + layernorm rsqrts
        bytes_accessed=4 * (in_elems + out_elems))


def encoder_layer(x, mask, params):
    """x: (B, S, D); mask: (S, S), CTRL convention (1 = masked).

    Returns (out, present) like EncoderLayer.forward:
      out (B, S, D), present (2, B, H, S, DEPTH).
    """
    (ln1_g, ln1_b, wq, bq, wk, bk, wv, bv, wd, bd,
     ln2_g, ln2_b, w1, b1, w2, b2) = params

    x2d = x.reshape(BS, D)

    # Joint (B*S, B*S) additive mask bias, baked host-side: the module's mask
    # within each batch block plus full masking of cross-batch pairs.
    batch_ids = jnp.arange(BS, dtype=jnp.int32) // S
    cross = (batch_ids[:, None] != batch_ids[None, :]).astype(jnp.float32)
    mask_bias = (jnp.tile(mask, (B, B)) + cross) * (-10000.0)

    # Lane-dense fused parameter slabs (host-side packing, done once by XLA).
    w_qkvd = jnp.concatenate([wq, wk, wv, wd], axis=1)                # (D, 4D)
    w_ffn = jnp.concatenate([w1, w2.T], axis=1)                       # (D, 2*DFF)
    b_all = jnp.concatenate([
        jnp.concatenate([bq, bk, bv, bd], axis=1),                    # (1, 4D)
        jnp.concatenate([b1, b2,
                         jnp.zeros((1, 4 * D - DFF - D), jnp.float32)], axis=1),
    ], axis=0)                                                        # (2, 4D)
    ln_all = jnp.concatenate([ln1_g, ln1_b, ln2_g, ln2_b], axis=0)    # (4, D)

    packed = pl.pallas_call(
        encoder_layer_kernel,
        out_shape=jax.ShapeDtypeStruct((BS, 3 * D), jnp.float32),
        cost_estimate=_cost_estimate(),
    )(x2d, mask_bias, w_qkvd, w_ffn, b_all, ln_all)

    out = packed[:, :D].reshape(B, S, D)

    def split_heads(t):                  # (BS, D) -> (B, H, S, DEPTH)
        return t.reshape(B, S, H, DEPTH).transpose(0, 2, 1, 3)

    present = jnp.stack([split_heads(packed[:, D:2 * D]),
                         split_heads(packed[:, 2 * D:])], axis=0)
    return out, present


# ---------------- pure-JAX reference (for correctness check) ----------------
def reference(x, mask, params):
    (ln1_g, ln1_b, wq, bq, wk, bk, wv, bv, wd, bd,
     ln2_g, ln2_b, w1, b1, w2, b2) = params

    def ln(t, g, b):
        mu = t.mean(-1, keepdims=True)
        var = ((t - mu) ** 2).mean(-1, keepdims=True)
        return (t - mu) / jnp.sqrt(var + EPS) * g + b

    normed = ln(x, ln1_g, ln1_b)
    q = normed @ wq + bq
    k = normed @ wk + bk
    v = normed @ wv + bv

    def split(t):
        return t.reshape(B, S, H, DEPTH).transpose(0, 2, 1, 3)

    qh, kh, vh = split(q), split(k), split(v)
    logits = jnp.einsum('bhqd,bhkd->bhqk', qh, kh) / math.sqrt(DEPTH)
    logits = logits + mask * (-10000.0)
    w = jax.nn.softmax(logits, axis=-1)
    o = jnp.einsum('bhqk,bhkd->bhqd', w, vh).transpose(0, 2, 1, 3).reshape(B, S, D)
    attn_out = o @ wd + bd
    out1 = x + attn_out
    out2n = ln(out1, ln2_g, ln2_b)
    ffn = jnp.maximum(out2n @ w1 + b1, 0.0) @ w2 + b2
    present = jnp.stack([kh, vh], axis=0)
    return out1 + ffn, present


def init_params(key):
    ks = jax.random.split(key, 6)

    def lin(k, din, dout):
        kw, kb = jax.random.split(k)
        w = jax.random.normal(kw, (din, dout), jnp.float32) * 0.02
        b = jax.random.normal(kb, (1, dout), jnp.float32) * 0.02
        return w, b

    wq, bq = lin(ks[0], D, D)
    wk, bk = lin(ks[1], D, D)
    wv, bv = lin(ks[2], D, D)
    wd, bd = lin(ks[3], D, D)
    w1, b1 = lin(ks[4], D, DFF)
    w2, b2 = lin(ks[5], DFF, D)
    ln1_g = jnp.ones((1, D), jnp.float32)
    ln1_b = jnp.zeros((1, D), jnp.float32)
    ln2_g = jnp.ones((1, D), jnp.float32)
    ln2_b = jnp.zeros((1, D), jnp.float32)
    return (ln1_g, ln1_b, wq, bq, wk, bk, wv, bv, wd, bd,
            ln2_g, ln2_b, w1, b1, w2, b2)


if __name__ == "__main__":
    key = jax.random.PRNGKey(0)
    kx, kp = jax.random.split(key)
    x = jax.random.normal(kx, (B, S, D), jnp.float32)
    # Causal mask, CTRL convention: upper-triangular ones mark masked positions.
    mask = jnp.triu(jnp.ones((S, S), jnp.float32), k=1)
    params = init_params(kp)

    out, present = encoder_layer(x, mask, params)
    out = jax.block_until_ready(out)
    present = jax.block_until_ready(present)

    ref_out, ref_present = reference(x, mask, params)
    assert out.shape == (B, S, D) and present.shape == (2, B, H, S, DEPTH)
    assert jnp.allclose(out, ref_out, atol=1e-4, rtol=1e-4)
    assert jnp.allclose(present, ref_present, atol=1e-4, rtol=1e-4)

    print("KERNEL_OK")
</pallas_src>

<mosaic_0001>
module attributes {stable_mosaic.version = 11 : i64} {
  func.func @encoder_layer_kernel(%arg0: memref<16x32xf32, #tpu.memory_space<vmem>>, %arg1: memref<16x16xf32, #tpu.memory_space<vmem>>, %arg2: memref<32x128xf32, #tpu.memory_space<vmem>>, %arg3: memref<32x128xf32, #tpu.memory_space<vmem>>, %arg4: memref<2x128xf32, #tpu.memory_space<vmem>>, %arg5: memref<4x32xf32, #tpu.memory_space<vmem>>, %arg6: memref<16x96xf32, #tpu.memory_space<vmem>>) attributes {dimension_semantics = [], scalar_prefetch = 0 : i64, scratch_operands = 0 : i64, tpu.core_type = #tpu.core_type<tc>} {
    %c0 = arith.constant 0 : index
    %c0_0 = arith.constant 0 : index
    %0 = vector.load %arg0[%c0, %c0_0] : memref<16x32xf32, #tpu.memory_space<vmem>>, vector<16x32xf32>
    %c0_1 = arith.constant 0 : index
    %c0_2 = arith.constant 0 : index
    %1 = vector.load %arg1[%c0_1, %c0_2] : memref<16x16xf32, #tpu.memory_space<vmem>>, vector<16x16xf32>
    %c0_3 = arith.constant 0 : index
    %c0_4 = arith.constant 0 : index
    %2 = vector.load %arg2[%c0_3, %c0_4] : memref<32x128xf32, #tpu.memory_space<vmem>>, vector<32x128xf32>
    %c0_5 = arith.constant 0 : index
    %c0_6 = arith.constant 0 : index
    %3 = vector.load %arg3[%c0_5, %c0_6] : memref<32x128xf32, #tpu.memory_space<vmem>>, vector<32x128xf32>
    %c0_7 = arith.constant 0 : index
    %c0_8 = arith.constant 0 : index
    %4 = vector.load %arg4[%c0_7, %c0_8] : memref<2x128xf32, #tpu.memory_space<vmem>>, vector<2x128xf32>
    %c0_9 = arith.constant 0 : index
    %c0_10 = arith.constant 0 : index
    %5 = vector.load %arg5[%c0_9, %c0_10] : memref<4x32xf32, #tpu.memory_space<vmem>>, vector<4x32xf32>
    %6 = vector.extract_strided_slice %5 {offsets = [0, 0], sizes = [1, 32], strides = [1, 1]} : vector<4x32xf32> to vector<1x32xf32>
    %7 = vector.extract_strided_slice %5 {offsets = [1, 0], sizes = [1, 32], strides = [1, 1]} : vector<4x32xf32> to vector<1x32xf32>
    %8 = vector.extract_strided_slice %5 {offsets = [2, 0], sizes = [1, 32], strides = [1, 1]} : vector<4x32xf32> to vector<1x32xf32>
    %9 = vector.extract_strided_slice %5 {offsets = [3, 0], sizes = [1, 32], strides = [1, 1]} : vector<4x32xf32> to vector<1x32xf32>
    %cst = arith.constant dense<0.000000e+00> : vector<16xf32>
    %10 = vector.multi_reduction <add>, %0, %cst [1] : vector<16x32xf32> to vector<16xf32>
    %11 = vector.shape_cast %10 : vector<16xf32> to vector<16x1xf32>
    %cst_11 = arith.constant 3.200000e+01 : f32
    %12 = vector.broadcast %cst_11 : f32 to vector<16x1xf32>
    %13 = arith.divf %11, %12 : vector<16x1xf32>
    %14 = vector.broadcast %13 : vector<16x1xf32> to vector<16x32xf32>
    %15 = arith.subf %0, %14 : vector<16x32xf32>
    %16 = arith.mulf %15, %15 : vector<16x32xf32>
    %cst_12 = arith.constant dense<0.000000e+00> : vector<16xf32>
    %17 = vector.multi_reduction <add>, %16, %cst_12 [1] : vector<16x32xf32> to vector<16xf32>
    %18 = vector.shape_cast %17 : vector<16xf32> to vector<16x1xf32>
    %cst_13 = arith.constant 3.200000e+01 : f32
    %19 = vector.broadcast %cst_13 : f32 to vector<16x1xf32>
    %20 = arith.divf %18, %19 : vector<16x1xf32>
    %21 = vector.broadcast %13 : vector<16x1xf32> to vector<16x32xf32>
    %22 = arith.subf %0, %21 : vector<16x32xf32>
    %cst_14 = arith.constant 9.99999997E-7 : f32
    %23 = vector.broadcast %cst_14 : f32 to vector<16x1xf32>
    %24 = arith.addf %20, %23 : vector<16x1xf32>
    %25 = math.rsqrt %24 : vector<16x1xf32>
    %26 = vector.broadcast %25 : vector<16x1xf32> to vector<16x32xf32>
    %27 = arith.mulf %22, %26 : vector<16x32xf32>
    %28 = vector.broadcast %6 : vector<1x32xf32> to vector<16x32xf32>
    %29 = arith.mulf %27, %28 : vector<16x32xf32>
    %30 = vector.broadcast %7 : vector<1x32xf32> to vector<16x32xf32>
    %31 = arith.addf %29, %30 : vector<16x32xf32>
    %32 = vector.extract_strided_slice %2 {offsets = [0, 0], sizes = [32, 96], strides = [1, 1]} : vector<32x128xf32> to vector<32x96xf32>
    %cst_15 = arith.constant dense<0.000000e+00> : vector<16x96xf32>
    %33 = tpu.matmul %31, %32, %cst_15 {dimension_numbers = #tpu.dot_dimension_numbers<[1], [0], [0], [1], [0, 0, 1, 1], [], []>} : vector<16x32xf32>, vector<32x96xf32>, vector<16x96xf32> -> vector<16x96xf32>
    %34 = vector.extract_strided_slice %4 {offsets = [0, 0], sizes = [1, 96], strides = [1, 1]} : vector<2x128xf32> to vector<1x96xf32>
    %35 = vector.broadcast %34 : vector<1x96xf32> to vector<16x96xf32>
    %36 = arith.addf %33, %35 : vector<16x96xf32>
    %37 = vector.extract_strided_slice %36 {offsets = [0, 0], sizes = [16, 8], strides = [1, 1]} : vector<16x96xf32> to vector<16x8xf32>
    %38 = vector.extract_strided_slice %36 {offsets = [0, 32], sizes = [16, 8], strides = [1, 1]} : vector<16x96xf32> to vector<16x8xf32>
    %39 = vector.extract_strided_slice %36 {offsets = [0, 64], sizes = [16, 8], strides = [1, 1]} : vector<16x96xf32> to vector<16x8xf32>
    %cst_16 = arith.constant dense<0.000000e+00> : vector<16x16xf32>
    %40 = tpu.matmul %37, %38, %cst_16 {dimension_numbers = #tpu.dot_dimension_numbers<[1], [1], [0], [0], [0, 0, 1, 0], [], []>} : vector<16x8xf32>, vector<16x8xf32>, vector<16x16xf32> -> vector<16x16xf32>
    %cst_17 = arith.constant 0.353553385 : f32
    %41 = vector.broadcast %cst_17 : f32 to vector<16x16xf32>
    %42 = arith.mulf %40, %41 : vector<16x16xf32>
    %43 = arith.addf %42, %1 : vector<16x16xf32>
    %cst_18 = arith.constant dense<0xFF800000> : vector<16xf32>
    %44 = vector.multi_reduction <maximumf>, %43, %cst_18 [1] : vector<16x16xf32> to vector<16xf32>
    %cst_19 = arith.constant 0xFF800000 : f32
    %45 = vector.broadcast %cst_19 : f32 to vector<16xf32>
    %46 = arith.maximumf %45, %44 : vector<16xf32>
    %47 = vector.shape_cast %46 : vector<16xf32> to vector<16x1xf32>
    %48 = vector.broadcast %47 : vector<16x1xf32> to vector<16x16xf32>
    %49 = arith.subf %43, %48 : vector<16x16xf32>
    %50 = math.exp %49 : vector<16x16xf32>
    %cst_20 = arith.constant dense<0.000000e+00> : vector<16xf32>
    %51 = vector.multi_reduction <add>, %50, %cst_20 [1] : vector<16x16xf32> to vector<16xf32>
    %52 = vector.shape_cast %51 : vector<16xf32> to vector<16x1xf32>
    %53 = vector.broadcast %52 : vector<16x1xf32> to vector<16x16xf32>
    %54 = arith.divf %50, %53 : vector<16x16xf32>
    %cst_21 = arith.constant dense<0.000000e+00> : vector<16x8xf32>
    %55 = tpu.matmul %54, %39, %cst_21 {dimension_numbers = #tpu.dot_dimension_numbers<[1], [0], [0], [1], [0, 0, 1, 1], [], []>} : vector<16x16xf32>, vector<16x8xf32>, vector<16x8xf32> -> vector<16x8xf32>
    %56 = vector.extract_strided_slice %36 {offsets = [0, 8], sizes = [16, 8], strides = [1, 1]} : vector<16x96xf32> to vector<16x8xf32>
    %57 = vector.extract_strided_slice %36 {offsets = [0, 40], sizes = [16, 8], strides = [1, 1]} : vector<16x96xf32> to vector<16x8xf32>
    %58 = vector.extract_strided_slice %36 {offsets = [0, 72], sizes = [16, 8], strides = [1, 1]} : vector<16x96xf32> to vector<16x8xf32>
    %cst_22 = arith.constant dense<0.000000e+00> : vector<16x16xf32>
    %59 = tpu.matmul %56, %57, %cst_22 {dimension_numbers = #tpu.dot_dimension_numbers<[1], [1], [0], [0], [0, 0, 1, 0], [], []>} : vector<16x8xf32>, vector<16x8xf32>, vector<16x16xf32> -> vector<16x16xf32>
    %cst_23 = arith.constant 0.353553385 : f32
    %60 = vector.broadcast %cst_23 : f32 to vector<16x16xf32>
    %61 = arith.mulf %59, %60 : vector<16x16xf32>
    %62 = arith.addf %61, %1 : vector<16x16xf32>
    %cst_24 = arith.constant dense<0xFF800000> : vector<16xf32>
    %63 = vector.multi_reduction <maximumf>, %62, %cst_24 [1] : vector<16x16xf32> to vector<16xf32>
    %cst_25 = arith.constant 0xFF800000 : f32
    %64 = vector.broadcast %cst_25 : f32 to vector<16xf32>
    %65 = arith.maximumf %64, %63 : vector<16xf32>
    %66 = vector.shape_cast %65 : vector<16xf32> to vector<16x1xf32>
    %67 = vector.broadcast %66 : vector<16x1xf32> to vector<16x16xf32>
    %68 = arith.subf %62, %67 : vector<16x16xf32>
    %69 = math.exp %68 : vector<16x16xf32>
    %cst_26 = arith.constant dense<0.000000e+00> : vector<16xf32>
    %70 = vector.multi_reduction <add>, %69, %cst_26 [1] : vector<16x16xf32> to vector<16xf32>
    %71 = vector.shape_cast %70 : vector<16xf32> to vector<16x1xf32>
    %72 = vector.broadcast %71 : vector<16x1xf32> to vector<16x16xf32>
    %73 = arith.divf %69, %72 : vector<16x16xf32>
    %cst_27 = arith.constant dense<0.000000e+00> : vector<16x8xf32>
    %74 = tpu.matmul %73, %58, %cst_27 {dimension_numbers = #tpu.dot_dimension_numbers<[1], [0], [0], [1], [0, 0, 1, 1], [], []>} : vector<16x16xf32>, vector<16x8xf32>, vector<16x8xf32> -> vector<16x8xf32>
    %75 = vector.extract_strided_slice %36 {offsets = [0, 16], sizes = [16, 8], strides = [1, 1]} : vector<16x96xf32> to vector<16x8xf32>
    %76 = vector.extract_strided_slice %36 {offsets = [0, 48], sizes = [16, 8], strides = [1, 1]} : vector<16x96xf32> to vector<16x8xf32>
    %77 = vector.extract_strided_slice %36 {offsets = [0, 80], sizes = [16, 8], strides = [1, 1]} : vector<16x96xf32> to vector<16x8xf32>
    %cst_28 = arith.constant dense<0.000000e+00> : vector<16x16xf32>
    %78 = tpu.matmul %75, %76, %cst_28 {dimension_numbers = #tpu.dot_dimension_numbers<[1], [1], [0], [0], [0, 0, 1, 0], [], []>} : vector<16x8xf32>, vector<16x8xf32>, vector<16x16xf32> -> vector<16x16xf32>
    %cst_29 = arith.constant 0.353553385 : f32
    %79 = vector.broadcast %cst_29 : f32 to vector<16x16xf32>
    %80 = arith.mulf %78, %79 : vector<16x16xf32>
    %81 = arith.addf %80, %1 : vector<16x16xf32>
    %cst_30 = arith.constant dense<0xFF800000> : vector<16xf32>
    %82 = vector.multi_reduction <maximumf>, %81, %cst_30 [1] : vector<16x16xf32> to vector<16xf32>
    %cst_31 = arith.constant 0xFF800000 : f32
    %83 = vector.broadcast %cst_31 : f32 to vector<16xf32>
    %84 = arith.maximumf %83, %82 : vector<16xf32>
    %85 = vector.shape_cast %84 : vector<16xf32> to vector<16x1xf32>
    %86 = vector.broadcast %85 : vector<16x1xf32> to vector<16x16xf32>
    %87 = arith.subf %81, %86 : vector<16x16xf32>
    %88 = math.exp %87 : vector<16x16xf32>
    %cst_32 = arith.constant dense<0.000000e+00> : vector<16xf32>
    %89 = vector.multi_reduction <add>, %88, %cst_32 [1] : vector<16x16xf32> to vector<16xf32>
    %90 = vector.shape_cast %89 : vector<16xf32> to vector<16x1xf32>
    %91 = vector.broadcast %90 : vector<16x1xf32> to vector<16x16xf32>
    %92 = arith.divf %88, %91 : vector<16x16xf32>
    %cst_33 = arith.constant dense<0.000000e+00> : vector<16x8xf32>
    %93 = tpu.matmul %92, %77, %cst_33 {dimension_numbers = #tpu.dot_dimension_numbers<[1], [0], [0], [1], [0, 0, 1, 1], [], []>} : vector<16x16xf32>, vector<16x8xf32>, vector<16x8xf32> -> vector<16x8xf32>
    %94 = vector.extract_strided_slice %36 {offsets = [0, 24], sizes = [16, 8], strides = [1, 1]} : vector<16x96xf32> to vector<16x8xf32>
    %95 = vector.extract_strided_slice %36 {offsets = [0, 56], sizes = [16, 8], strides = [1, 1]} : vector<16x96xf32> to vector<16x8xf32>
    %96 = vector.extract_strided_slice %36 {offsets = [0, 88], sizes = [16, 8], strides = [1, 1]} : vector<16x96xf32> to vector<16x8xf32>
    %cst_34 = arith.constant dense<0.000000e+00> : vector<16x16xf32>
    %97 = tpu.matmul %94, %95, %cst_34 {dimension_numbers = #tpu.dot_dimension_numbers<[1], [1], [0], [0], [0, 0, 1, 0], [], []>} : vector<16x8xf32>, vector<16x8xf32>, vector<16x16xf32> -> vector<16x16xf32>
    %cst_35 = arith.constant 0.353553385 : f32
    %98 = vector.broadcast %cst_35 : f32 to vector<16x16xf32>
    %99 = arith.mulf %97, %98 : vector<16x16xf32>
    %100 = arith.addf %99, %1 : vector<16x16xf32>
    %cst_36 = arith.constant dense<0xFF800000> : vector<16xf32>
    %101 = vector.multi_reduction <maximumf>, %100, %cst_36 [1] : vector<16x16xf32> to vector<16xf32>
    %cst_37 = arith.constant 0xFF800000 : f32
    %102 = vector.broadcast %cst_37 : f32 to vector<16xf32>
    %103 = arith.maximumf %102, %101 : vector<16xf32>
    %104 = vector.shape_cast %103 : vector<16xf32> to vector<16x1xf32>
    %105 = vector.broadcast %104 : vector<16x1xf32> to vector<16x16xf32>
    %106 = arith.subf %100, %105 : vector<16x16xf32>
    %107 = math.exp %106 : vector<16x16xf32>
    %cst_38 = arith.constant dense<0.000000e+00> : vector<16xf32>
    %108 = vector.multi_reduction <add>, %107, %cst_38 [1] : vector<16x16xf32> to vector<16xf32>
    %109 = vector.shape_cast %108 : vector<16xf32> to vector<16x1xf32>
    %110 = vector.broadcast %109 : vector<16x1xf32> to vector<16x16xf32>
    %111 = arith.divf %107, %110 : vector<16x16xf32>
    %cst_39 = arith.constant dense<0.000000e+00> : vector<16x8xf32>
    %112 = tpu.matmul %111, %96, %cst_39 {dimension_numbers = #tpu.dot_dimension_numbers<[1], [0], [0], [1], [0, 0, 1, 1], [], []>} : vector<16x16xf32>, vector<16x8xf32>, vector<16x8xf32> -> vector<16x8xf32>
    %113 = tpu.concatenate %55, %74, %93, %112 in 1 : vector<16x8xf32>, vector<16x8xf32>, vector<16x8xf32>, vector<16x8xf32> -> vector<16x32xf32>
    %114 = vector.extract_strided_slice %2 {offsets = [0, 96], sizes = [32, 32], strides = [1, 1]} : vector<32x128xf32> to vector<32x32xf32>
    %cst_40 = arith.constant dense<0.000000e+00> : vector<16x32xf32>
    %115 = tpu.matmul %113, %114, %cst_40 {dimension_numbers = #tpu.dot_dimension_numbers<[1], [0], [0], [1], [0, 0, 1, 1], [], []>} : vector<16x32xf32>, vector<32x32xf32>, vector<16x32xf32> -> vector<16x32xf32>
    %116 = vector.extract_strided_slice %4 {offsets = [0, 96], sizes = [1, 32], strides = [1, 1]} : vector<2x128xf32> to vector<1x32xf32>
    %117 = vector.broadcast %116 : vector<1x32xf32> to vector<16x32xf32>
    %118 = arith.addf %115, %117 : vector<16x32xf32>
    %119 = arith.addf %0, %118 : vector<16x32xf32>
    %cst_41 = arith.constant dense<0.000000e+00> : vector<16xf32>
    %120 = vector.multi_reduction <add>, %119, %cst_41 [1] : vector<16x32xf32> to vector<16xf32>
    %121 = vector.shape_cast %120 : vector<16xf32> to vector<16x1xf32>
    %cst_42 = arith.constant 3.200000e+01 : f32
    %122 = vector.broadcast %cst_42 : f32 to vector<16x1xf32>
    %123 = arith.divf %121, %122 : vector<16x1xf32>
    %124 = vector.broadcast %123 : vector<16x1xf32> to vector<16x32xf32>
    %125 = arith.subf %119, %124 : vector<16x32xf32>
    %126 = arith.mulf %125, %125 : vector<16x32xf32>
    %cst_43 = arith.constant dense<0.000000e+00> : vector<16xf32>
    %127 = vector.multi_reduction <add>, %126, %cst_43 [1] : vector<16x32xf32> to vector<16xf32>
    %128 = vector.shape_cast %127 : vector<16xf32> to vector<16x1xf32>
    %cst_44 = arith.constant 3.200000e+01 : f32
    %129 = vector.broadcast %cst_44 : f32 to vector<16x1xf32>
    %130 = arith.divf %128, %129 : vector<16x1xf32>
    %131 = vector.broadcast %123 : vector<16x1xf32> to vector<16x32xf32>
    %132 = arith.subf %119, %131 : vector<16x32xf32>
    %cst_45 = arith.constant 9.99999997E-7 : f32
    %133 = vector.broadcast %cst_45 : f32 to vector<16x1xf32>
    %134 = arith.addf %130, %133 : vector<16x1xf32>
    %135 = math.rsqrt %134 : vector<16x1xf32>
    %136 = vector.broadcast %135 : vector<16x1xf32> to vector<16x32xf32>
    %137 = arith.mulf %132, %136 : vector<16x32xf32>
    %138 = vector.broadcast %8 : vector<1x32xf32> to vector<16x32xf32>
    %139 = arith.mulf %137, %138 : vector<16x32xf32>
    %140 = vector.broadcast %9 : vector<1x32xf32> to vector<16x32xf32>
    %141 = arith.addf %139, %140 : vector<16x32xf32>
    %142 = vector.extract_strided_slice %3 {offsets = [0, 0], sizes = [32, 64], strides = [1, 1]} : vector<32x128xf32> to vector<32x64xf32>
    %cst_46 = arith.constant dense<0.000000e+00> : vector<16x64xf32>
    %143 = tpu.matmul %141, %142, %cst_46 {dimension_numbers = #tpu.dot_dimension_numbers<[1], [0], [0], [1], [0, 0, 1, 1], [], []>} : vector<16x32xf32>, vector<32x64xf32>, vector<16x64xf32> -> vector<16x64xf32>
    %144 = vector.extract_strided_slice %4 {offsets = [1, 0], sizes = [1, 64], strides = [1, 1]} : vector<2x128xf32> to vector<1x64xf32>
    %145 = vector.broadcast %144 : vector<1x64xf32> to vector<16x64xf32>
    %146 = arith.addf %143, %145 : vector<16x64xf32>
    %cst_47 = arith.constant 0.000000e+00 : f32
    %147 = vector.broadcast %cst_47 : f32 to vector<16x64xf32>
    %148 = arith.maximumf %146, %147 : vector<16x64xf32>
    %149 = vector.extract_strided_slice %3 {offsets = [0, 64], sizes = [32, 64], strides = [1, 1]} : vector<32x128xf32> to vector<32x64xf32>
    %cst_48 = arith.constant dense<0.000000e+00> : vector<16x32xf32>
    %150 = tpu.matmul %148, %149, %cst_48 {dimension_numbers = #tpu.dot_dimension_numbers<[1], [1], [0], [0], [0, 0, 1, 0], [], []>} : vector<16x64xf32>, vector<32x64xf32>, vector<16x32xf32> -> vector<16x32xf32>
    %151 = vector.extract_strided_slice %4 {offsets = [1, 64], sizes = [1, 32], strides = [1, 1]} : vector<2x128xf32> to vector<1x32xf32>
    %152 = vector.broadcast %151 : vector<1x32xf32> to vector<16x32xf32>
    %153 = arith.addf %150, %152 : vector<16x32xf32>
    %154 = arith.addf %119, %153 : vector<16x32xf32>
    %155 = vector.extract_strided_slice %36 {offsets = [0, 32], sizes = [16, 64], strides = [1, 1]} : vector<16x96xf32> to vector<16x64xf32>
    %156 = tpu.concatenate %154, %155 in 1 : vector<16x32xf32>, vector<16x64xf32> -> vector<16x96xf32>
    %c0_49 = arith.constant 0 : index
    %c0_50 = arith.constant 0 : index
    %157 = vector.load %arg6[%c0_49, %c0_50] : memref<16x96xf32, #tpu.memory_space<vmem>>, vector<16x96xf32>
    tpu.vector_store %arg6[%c0_49, %c0_50], %156 {strides = array<i32>} : memref<16x96xf32, #tpu.memory_space<vmem>>, vector<16x96xf32>,
    return
  }
}

</mosaic_0001>

<llo_original>
// kernel: tpu_custom_call.1
$region0: #{tpu_custom_call.1}
  #allocation0 [shape = 'u32[]', space=smem, size = 0x4, offset = 0x4, fixed_abs, tag = 'smem constant byte address 0x4 - core index']
  #allocation1 [shape = 'u32[144,128]{1,0:T(1,128)}', space=vmem, size = 0x12000, scoped, tag = 'internal scratch']
  %s0 = inlined_call_operand.hbm [shape: f32[16,32], index: 0, kind: input, shape index: {}]
  %s1 = inlined_call_operand.hbm [shape: f32[16,16], index: 1, kind: input, shape index: {}]
  %s2 = inlined_call_operand.hbm [shape: f32[32,128], index: 2, kind: input, shape index: {}]
  %s3 = inlined_call_operand.hbm [shape: f32[32,128], index: 3, kind: input, shape index: {}]
  %s4 = inlined_call_operand.vmem [shape: f32[2,128], index: 4, kind: input, shape index: {}]
  %s5 = inlined_call_operand.vmem [shape: f32[4,32], index: 5, kind: input, shape index: {}]
  %s6 = inlined_call_operand.hbm [shape: f32[16,96], index: 6, kind: output, shape index: {}]
  %s7 = sld [smem:[#allocation0]]
  $region50: #{tpu_custom_call.1} parent=0
    _
  %s9 = ssub.s32 1, %s7
  %s10 = scalar_select 0, %s9, %s7
  $region1: #{tpu_custom_call.1} parent=0
    #allocation2 [shape = 'u8[8192]{0}', space=vmem, size = 0x2000, scoped, tag = 'input window, operand 0, single buffered']
    #allocation3 [shape = 's32[1]{0}', space=sflag, size = 0x4, scoped, tag = 'scoped memory for tpu_custom_call.1']
    #allocation4 [shape = 's32[1]{0}', space=sflag, size = 0x4, scoped, tag = 'scoped memory for tpu_custom_call.1']
    #allocation5 [shape = 'u8[8192]{0}', space=vmem, size = 0x2000, scoped, tag = 'input window, operand 1, single buffered']
    #allocation6 [shape = 's32[1]{0}', space=sflag, size = 0x4, scoped, tag = 'scoped memory for tpu_custom_call.1']
    #allocation7 [shape = 'u8[16384]{0}', space=vmem, size = 0x4000, scoped, tag = 'input window, operand 2, single buffered']
    #allocation8 [shape = 'u8[16384]{0}', space=vmem, size = 0x4000, scoped, tag = 'input window, operand 3, single buffered']
    #allocation9 [shape = 's32[1]{0}', space=sflag, size = 0x4, scoped, tag = 'scoped memory for tpu_custom_call.1']
    #allocation10 [shape = 'u8[8192]{0}', space=vmem, size = 0x2000, scoped, tag = 'output window, operand 0, single buffered']
    %11 = vsyncpa [#allocation3], 0
    %12 = vsyncpa [#allocation6], 0
    %13 = vsyncpa [#allocation9], 0
    %14 = vsyncpa [#allocation4], 0
    // Predicated region
    $region2: #{tpu_custom_call.1} parent=1 // pred_check
      _
    $region3: #{tpu_custom_call.1} parent=1 // pred_check_branch
      %16 = sbr.rel (0) target = $region5
    $region4: #{tpu_custom_call.1} parent=1 // pred_region
      %s18 = ssub.s32 256, 256
      %19 = vsyncadd [#allocation3], %s18
      %s20 = sshll.u32 [#allocation2], 4
      %s21 = int_to_ptr.vmem [resolvable:$true] %s20
      %26 = dma.hbm_to_vmem [thread:$0]  %s0, 256, %s21, [#allocation3], 128, 128, 8
    $region5: #{tpu_custom_call.1} parent=1 // pred_fallthru
      _
    // Predicated region
    $region6: #{tpu_custom_call.1} parent=1 // pred_check
      _
    $region7: #{tpu_custom_call.1} parent=1 // pred_check_branch
      %28 = sbr.rel (0) target = $region9
    $region8: #{tpu_custom_call.1} parent=1 // pred_region
      %s30 = ssub.s32 256, 256
      %31 = vsyncadd [#allocation6], %s30
      %s32 = sshll.u32 [#allocation5], 4
      %s33 = int_to_ptr.vmem [resolvable:$true] %s32
      %38 = dma.hbm_to_vmem [thread:$0]  %s1, 256, %s33, [#allocation6], 128, 128, 8
    $region9: #{tpu_custom_call.1} parent=1 // pred_fallthru
      _
    // Predicated region
    $region10: #{tpu_custom_call.1} parent=1 // pred_check
      _
    $region11: #{tpu_custom_call.1} parent=1 // pred_check_branch
      %40 = sbr.rel (0) target = $region13
    $region12: #{tpu_custom_call.1} parent=1 // pred_region
      %s42 = ssub.s32 512, 512
      %43 = vsyncadd [#allocation6], %s42
      %s44 = sshll.u32 [#allocation7], 4
      %s45 = int_to_ptr.vmem [resolvable:$true] %s44
      %50 = dma.hbm_to_vmem [thread:$0]  %s2, 512, %s45, [#allocation6], 128, 128, 8
    $region13: #{tpu_custom_call.1} parent=1 // pred_fallthru
      _
    // Predicated region
    $region14: #{tpu_custom_call.1} parent=1 // pred_check
      _
    $region15: #{tpu_custom_call.1} parent=1 // pred_check_branch
      %52 = sbr.rel (0) target = $region17
    $region16: #{tpu_custom_call.1} parent=1 // pred_region
      %s54 = ssub.s32 512, 512
      %55 = vsyncadd [#allocation9], %s54
      %s56 = sshll.u32 [#allocation8], 4
      %s57 = int_to_ptr.vmem [resolvable:$true] %s56
      %62 = dma.hbm_to_vmem [thread:$0]  %s3, 512, %s57, [#allocation9], 128, 128, 8
    $region17: #{tpu_custom_call.1} parent=1 // pred_fallthru
      _
    // Predicated region
    $region18: #{tpu_custom_call.1} parent=1 // pred_check
      _
    $region19: #{tpu_custom_call.1} parent=1 // pred_check_branch
      %64 = sbr.rel (0) target = $region21
    $region20: #{tpu_custom_call.1} parent=1 // pred_region
      _
    $region21: #{tpu_custom_call.1} parent=1 // pred_fallthru
      _
    // Predicated region
    $region22: #{tpu_custom_call.1} parent=1 // pred_check
      _
    $region23: #{tpu_custom_call.1} parent=1 // pred_check_branch
      %66 = sbr.rel (0) target = $region25
    $region24: #{tpu_custom_call.1} parent=1 // pred_region
      _
    $region25: #{tpu_custom_call.1} parent=1 // pred_fallthru
      _
    // Predicated region
    $region26: #{tpu_custom_call.1} parent=1 // pred_check
      _
    $region27: #{tpu_custom_call.1} parent=1 // pred_check_branch
      %68 = sbr.rel (0) target = $region29
    $region28: #{tpu_custom_call.1} parent=1 // pred_region
      %69 = dma.done [#allocation3], 256
    $region29: #{tpu_custom_call.1} parent=1 // pred_fallthru
      _
    // Predicated region
    $region30: #{tpu_custom_call.1} parent=1 // pred_check
      _
    $region31: #{tpu_custom_call.1} parent=1 // pred_check_branch
      %71 = sbr.rel (0) target = $region33
    $region32: #{tpu_custom_call.1} parent=1 // pred_region
      %72 = dma.done [#allocation6], 256
    $region33: #{tpu_custom_call.1} parent=1 // pred_fallthru
      _
    // Predicated region
    $region34: #{tpu_custom_call.1} parent=1 // pred_check
      _
    $region35: #{tpu_custom_call.1} parent=1 // pred_check_branch
      %74 = sbr.rel (0) target = $region37
    $region36: #{tpu_custom_call.1} parent=1 // pred_region
      %75 = dma.done [#allocation6], 512
    $region37: #{tpu_custom_call.1} parent=1 // pred_fallthru
      _
    // Predicated region
    $region38: #{tpu_custom_call.1} parent=1 // pred_check
      _
    $region39: #{tpu_custom_call.1} parent=1 // pred_check_branch
      %77 = sbr.rel (0) target = $region41
    $region40: #{tpu_custom_call.1} parent=1 // pred_region
      %78 = dma.done [#allocation9], 512
    $region41: #{tpu_custom_call.1} parent=1 // pred_fallthru
      _
    %v79 = vld [vmem:[#allocation2] sm:$0xff]
    %v80 = vld [vmem:[#allocation2 + $0x8] sm:$0xff]
    %v81 = vld [vmem:[#allocation5] sm:$0xff]
    %v82 = vld [vmem:[#allocation5 + $0x8] sm:$0xff]
    %v83 = vld [vmem:[#allocation7] sm:$0xff]
    %v84 = vld [vmem:[#allocation7 + $0x8] sm:$0xff]
    %v85 = vld [vmem:[#allocation7 + $0x10] sm:$0xff]
    %v86 = vld [vmem:[#allocation7 + $0x18] sm:$0xff]
    %v87 = vld [vmem:[#allocation8] sm:$0xff]
    %v88 = vld [vmem:[#allocation8 + $0x8] sm:$0xff]
    %v89 = vld [vmem:[#allocation8 + $0x10] sm:$0xff]
    %v90 = vld [vmem:[#allocation8 + $0x18] sm:$0xff]
    %v91 = vld [vmem:[%s4] sm:$0x3]
    %v92 = vld [vmem:[%s5] sm:$0xf]
    %vm93 = vcmask 261120
    %v94 = vsel %vm93, %v79, 0.0
    %95 = vadd.xlane.f32.xlu0 %v94
    %v96 = vpop.xlane.xlu0 %95
    %v97 = vsel %vm93, %v80, 0.0
    %98 = vadd.xlane.f32.xlu0 %v97
    %v99 = vpop.xlane.xlu0 %98
    %v100 = vrcp.pop 32.0
    %v101 = vmul.f32 %v96, %v100
    %v102 = vmul.f32 %v99, %v100
    %v103 = vsub.f32 %v79, %v101
    %v104 = vsub.f32 %v80, %v102
    %v105 = vmul.f32 %v103, %v103
    %v106 = vmul.f32 %v104, %v104
    %v107 = vsel %vm93, %v105, 0.0
    %108 = vadd.xlane.f32.xlu0 %v107
    %v109 = vpop.xlane.xlu0 %108
    %v110 = vsel %vm93, %v106, 0.0
    %111 = vadd.xlane.f32.xlu0 %v110
    %v112 = vpop.xlane.xlu0 %111
    %v113 = vmul.f32 %v109, %v100
    %v114 = vmul.f32 %v112, %v100
    %v115 = vadd.f32 %v113, 1e-06
    %v116 = vadd.f32 %v114, 1e-06
    %v117 = vrsqrt.pop %v115
    %v118 = vrsqrt.pop %v116
    %v119 = vmul.f32 %v103, %v117
    %v120 = vmul.f32 %v104, %v118
    %v121 = vlaneseq
    %v122 = vshrl.u32 %v121, 7
    %v123 = vsub.s32 0, %v122
    %v124 = vrot.slane %v92, %v123
    %v125 = vmul.f32 %v119, %v124
    %v126 = vmul.f32 %v120, %v124
    %v127 = vlaneseq
    %v128 = vshrl.u32 %v127, 7
    %v129 = vsub.s32 1, %v128
    %v130 = vrot.slane %v92, %v129
    %v131 = vadd.f32 %v125, %v130
    %v132 = vadd.f32 %v126, %v130
    %v133 = vlaneseq
    %v134 = vshrl.u32 %v133, 7
    %v135 = vsub.s32 0, %v134
    %v136 = vrot.slane %v91, %v135
    %v138 = vsel %vm93, %v131, 0
    %v141 = vsel %vm93, %v132, 0
    %143 = vmatprep.subr.mxu0 0.0
    %144 = vmatpush1.msra.mxu0 %v83
    %145 = vmatprep.subr.mxu0 0.0
    %146 = vmatpush1.msra.mxu0 %v84
    %147 = vmatprep.subr.mxu0 0.0
    %148 = vmatpush1.msra.mxu0 %v85
    %149 = vmatprep.subr.mxu0 0.0
    %150 = vmatpush1.msra.mxu0 %v86
    %151 = vmatprep.subr.mxu0 0.0
    %152 = vmatpush1.msra.mxu0 0.0
    %153 = vmatprep.subr.mxu0 0.0
    %154 = vmatpush1.msra.mxu0 0.0
    %155 = vmatprep.subr.mxu0 0.0
    %156 = vmatpush1.msra.mxu0 0.0
    %157 = vmatprep.subr.mxu0 0.0
    %158 = vmatpush1.msra.mxu0 0.0
    %159 = vmatprep.subr.mxu0 0.0
    %160 = vmatpush1.msra.mxu0 0.0
    %161 = vmatprep.subr.mxu0 0.0
    %162 = vmatpush1.msra.mxu0 0.0
    %163 = vmatprep.subr.mxu0 0.0
    %164 = vmatpush1.msra.mxu0 0.0
    %165 = vmatprep.subr.mxu0 0.0
    %166 = vmatpush1.msra.mxu0 0.0
    %167 = vmatprep.subr.mxu0 0.0
    %168 = vmatpush1.msra.mxu0 0.0
    %169 = vmatprep.subr.mxu0 0.0
    %170 = vmatpush1.msra.mxu0 0.0
    %171 = vmatprep.subr.mxu0 0.0
    %172 = vmatpush1.msra.mxu0 0.0
    %173 = vmatprep.subr.mxu0 0.0
    %174 = vmatpush1.msra.mxu0 0.0
    %175 = vmatprep.subr.mxu0 0.0
    %176 = vmatpush1.msra.mxu0 0.0
    %177 = vmatprep.subr.mxu0 0.0
    %178 = vmatpush1.msra.mxu0 0.0
    %179 = vmatprep.subr.mxu0 0.0
    %180 = vmatpush1.msra.mxu0 0.0
    %181 = vmatprep.subr.mxu0 0.0
    %182 = vmatpush1.msra.mxu0 0.0
    %183 = vmatprep.subr.mxu0 0.0
    %184 = vmatpush1.msra.mxu0 0.0
    %185 = vmatprep.subr.mxu0 0.0
    %186 = vmatpush1.msra.mxu0 0.0
    %187 = vmatprep.subr.mxu0 0.0
    %188 = vmatpush1.msra.mxu0 0.0
    %189 = vmatprep.subr.mxu0 0.0
    %190 = vmatpush1.msra.mxu0 0.0
    %191 = vmatprep.subr.mxu0 0.0
    %192 = vmatpush1.msra.mxu0 0.0
    %193 = vmatprep.subr.mxu0 0.0
    %194 = vmatpush1.msra.mxu0 0.0
    %195 = vmatprep.subr.mxu0 0.0
    %196 = vmatpush1.msra.mxu0 0.0
    %197 = vmatprep.subr.mxu0 0.0
    %198 = vmatpush1.msra.mxu0 0.0
    %199 = vmatprep.subr.mxu0 0.0
    %200 = vmatpush1.msra.mxu0 0.0
    %201 = vmatprep.subr.mxu0 0.0
    %202 = vmatpush1.msra.mxu0 0.0
    %203 = vmatprep.subr.mxu0 0.0
    %204 = vmatpush1.msra.mxu0 0.0
    %205 = vmatprep.subr.mxu0 0.0
    %206 = vmatpush1.msra.mxu0 0.0
    %207 = vmatprep.mubr.f32.mxu0 0.0
    %208 = vmatmul.mubr.f32.gmra.mrb[0].mxu0 %v138
    %v209 = vpop.f32.mrb[0].mxu0
    %v210 = vadd.f32 %v136, %v209
    %v211 = vpop.f32.mrb[0].mxu0
    %212 = vmatprep.mubr.f32.mxu0 0.0
    %213 = vmatmul.mubr.f32.gmra.mrb[0].mxu0 %v141
    %v214 = vpop.f32.mrb[0].mxu0
    %v215 = vadd.f32 %v136, %v214
    %v216 = vpop.f32.mrb[0].mxu0
    %217 = vdwg.mxu0
    %220 = vrot.lane.b32.xlu0 %v210, 96
    %v221 = vpop.permute.xlu0 %220
    %222 = vrot.lane.b32.xlu0 %v215, 96
    %v223 = vpop.permute.xlu0 %222
    %vm224 = vcmask 64512
    %v225 = vsel %vm224, %v210, 0
    %v227 = vsel %vm224, %v215, 0
    %v229 = vsel %vm224, %v221, 0
    %v231 = vsel %vm224, %v223, 0
    %233 = vmatprep.subr.mxu0 0.0
    %234 = vmatpush1.xpose.msra.mxu0 %v229
    %235 = vmatprep.subr.mxu0 0.0
    %236 = vmatpush1.xpose.msra.mxu0 %v231
    %237 = vmatprep.subr.mxu0 0.0
    %238 = vmatpush1.xpose.msra.mxu0 0.0
    %239 = vmatprep.subr.mxu0 0.0
    %240 = vmatpush1.xpose.msra.mxu0 0.0
    %241 = vmatprep.subr.mxu0 0.0
    %242 = vmatpush1.xpose.msra.mxu0 0.0
    %243 = vmatprep.subr.mxu0 0.0
    %244 = vmatpush1.xpose.msra.mxu0 0.0
    %245 = vmatprep.subr.mxu0 0.0
    %246 = vmatpush1.xpose.msra.mxu0 0.0
    %247 = vmatprep.subr.mxu0 0.0
    %248 = vmatpush1.xpose.msra.mxu0 0.0
    %249 = vmatprep.subr.mxu0 0.0
    %250 = vmatpush1.xpose.msra.mxu0 0.0
    %251 = vmatprep.subr.mxu0 0.0
    %252 = vmatpush1.xpose.msra.mxu0 0.0
    %253 = vmatprep.subr.mxu0 0.0
    %254 = vmatpush1.xpose.msra.mxu0 0.0
    %255 = vmatprep.subr.mxu0 0.0
    %256 = vmatpush1.xpose.msra.mxu0 0.0
    %257 = vmatprep.subr.mxu0 0.0
    %258 = vmatpush1.xpose.msra.mxu0 0.0
    %259 = vmatprep.subr.mxu0 0.0
    %260 = vmatpush1.xpose.msra.mxu0 0.0
    %261 = vmatprep.subr.mxu0 0.0
    %262 = vmatpush1.xpose.msra.mxu0 0.0
    %263 = vmatprep.subr.mxu0 0.0
    %264 = vmatpush1.xpose.msra.mxu0 0.0
    %265 = vmatprep.subr.mxu0 0.0
    %266 = vmatpush1.xpose.msra.mxu0 0.0
    %267 = vmatprep.subr.mxu0 0.0
    %268 = vmatpush1.xpose.msra.mxu0 0.0
    %269 = vmatprep.subr.mxu0 0.0
    %270 = vmatpush1.xpose.msra.mxu0 0.0
    %271 = vmatprep.subr.mxu0 0.0
    %272 = vmatpush1.xpose.msra.mxu0 0.0
    %273 = vmatprep.subr.mxu0 0.0
    %274 = vmatpush1.xpose.msra.mxu0 0.0
    %275 = vmatprep.subr.mxu0 0.0
    %276 = vmatpush1.xpose.msra.mxu0 0.0
    %277 = vmatprep.subr.mxu0 0.0
    %278 = vmatpush1.xpose.msra.mxu0 0.0
    %279 = vmatprep.subr.mxu0 0.0
    %280 = vmatpush1.xpose.msra.mxu0 0.0
    %281 = vmatprep.subr.mxu0 0.0
    %282 = vmatpush1.xpose.msra.mxu0 0.0
    %283 = vmatprep.subr.mxu0 0.0
    %284 = vmatpush1.xpose.msra.mxu0 0.0
    %285 = vmatprep.subr.mxu0 0.0
    %286 = vmatpush1.xpose.msra.mxu0 0.0
    %287 = vmatprep.subr.mxu0 0.0
    %288 = vmatpush1.xpose.msra.mxu0 0.0
    %289 = vmatprep.subr.mxu0 0.0
    %290 = vmatpush1.xpose.msra.mxu0 0.0
    %291 = vmatprep.subr.mxu0 0.0
    %292 = vmatpush1.xpose.msra.mxu0 0.0
    %293 = vmatprep.subr.mxu0 0.0
    %294 = vmatpush1.xpose.msra.mxu0 0.0
    %295 = vmatprep.subr.mxu0 0.0
    %296 = vmatpush1.xpose.msra.mxu0 0.0
    %297 = vmatprep.mubr.f32.mxu0 0.0
    %298 = vmatmul.mubr.f32.gmra.mrb[0].mxu0 %v225
    %v299 = vpop.f32.mrb[0].mxu0
    %v300 = vadd.f32 0.0, %v299
    %v301 = vpop.f32.mrb[0].mxu0
    %302 = vmatprep.mubr.f32.mxu0 0.0
    %303 = vmatmul.mubr.f32.gmra.mrb[0].mxu0 %v227
    %v304 = vpop.f32.mrb[0].mxu0
    %v305 = vadd.f32 0.0, %v304
    %v306 = vpop.f32.mrb[0].mxu0
    %307 = vdwg.mxu0
    %v308 = vmul.f32 %v300, 0.35355338
    %v309 = vmul.f32 %v305, 0.35355338
    %v310 = vadd.f32 %v308, %v81
    %v311 = vadd.f32 %v309, %v82
    %vm312 = vcmask 130048
    %v313 = vsel %vm312, %v310, -inf
    %314 = vmax.xlane.f32.xlu0 %v313
    %v315 = vpop.xlane.xlu0 %314
    %v316 = vsel %vm312, %v311, -inf
    %317 = vmax.xlane.f32.xlu0 %v316
    %v318 = vpop.xlane.xlu0 %317
    %v319 = vsub.f32 %v310, %v315
    %v320 = vsub.f32 %v311, %v318
    %v321 = vmul.f32 %v319, 1.442695
    %v322 = vpow.pop %v321
    %v323 = vmul.f32 %v320, 1.442695
    %v324 = vpow.pop %v323
    %v325 = vsel %vm312, %v322, 0.0
    %326 = vadd.xlane.f32.xlu0 %v325
    %v327 = vpop.xlane.xlu0 %326
    %v328 = vsel %vm312, %v324, 0.0
    %329 = vadd.xlane.f32.xlu0 %v328
    %v330 = vpop.xlane.xlu0 %329
    %v331 = vrcp.pop %v327
    %v332 = vmul.f32 %v322, %v331
    %v333 = vrcp.pop %v330
    %v334 = vmul.f32 %v324, %v333
    %335 = vrot.lane.b32.xlu0 %v210, 64
    %v336 = vpop.permute.xlu0 %335
    %337 = vrot.lane.b32.xlu0 %v215, 64
    %v338 = vpop.permute.xlu0 %337
    %v342 = vsel %vm312, %v332, 0
    %v345 = vsel %vm312, %v334, 0
    %347 = vmatprep.subr.mxu0 0.0
    %348 = vmatpush1.msra.mxu0 %v336
    %349 = vmatprep.subr.mxu0 0.0
    %350 = vmatpush1.msra.mxu0 %v338
    %351 = vmatprep.subr.mxu0 0.0
    %352 = vmatpush1.msra.mxu0 0.0
    %353 = vmatprep.subr.mxu0 0.0
    %354 = vmatpush1.msra.mxu0 0.0
    %355 = vmatprep.subr.mxu0 0.0
    %356 = vmatpush1.msra.mxu0 0.0
    %357 = vmatprep.subr.mxu0 0.0
    %358 = vmatpush1.msra.mxu0 0.0
    %359 = vmatprep.subr.mxu0 0.0
    %360 = vmatpush1.msra.mxu0 0.0
    %361 = vmatprep.subr.mxu0 0.0
    %362 = vmatpush1.msra.mxu0 0.0
    %363 = vmatprep.subr.mxu0 0.0
    %364 = vmatpush1.msra.mxu0 0.0
    %365 = vmatprep.subr.mxu0 0.0
    %366 = vmatpush1.msra.mxu0 0.0
    %367 = vmatprep.subr.mxu0 0.0
    %368 = vmatpush1.msra.mxu0 0.0
    %369 = vmatprep.subr.mxu0 0.0
    %370 = vmatpush1.msra.mxu0 0.0
    %371 = vmatprep.subr.mxu0 0.0
    %372 = vmatpush1.msra.mxu0 0.0
    %373 = vmatprep.subr.mxu0 0.0
    %374 = vmatpush1.msra.mxu0 0.0
    %375 = vmatprep.subr.mxu0 0.0
    %376 = vmatpush1.msra.mxu0 0.0
    %377 = vmatprep.subr.mxu0 0.0
    %378 = vmatpush1.msra.mxu0 0.0
    %379 = vmatprep.subr.mxu0 0.0
    %380 = vmatpush1.msra.mxu0 0.0
    %381 = vmatprep.subr.mxu0 0.0
    %382 = vmatpush1.msra.mxu0 0.0
    %383 = vmatprep.subr.mxu0 0.0
    %384 = vmatpush1.msra.mxu0 0.0
    %385 = vmatprep.subr.mxu0 0.0
    %386 = vmatpush1.msra.mxu0 0.0
    %387 = vmatprep.subr.mxu0 0.0
    %388 = vmatpush1.msra.mxu0 0.0
    %389 = vmatprep.subr.mxu0 0.0
    %390 = vmatpush1.msra.mxu0 0.0
    %391 = vmatprep.subr.mxu0 0.0
    %392 = vmatpush1.msra.mxu0 0.0
    %393 = vmatprep.subr.mxu0 0.0
    %394 = vmatpush1.msra.mxu0 0.0
    %395 = vmatprep.subr.mxu0 0.0
    %396 = vmatpush1.msra.mxu0 0.0
    %397 = vmatprep.subr.mxu0 0.0
    %398 = vmatpush1.msra.mxu0 0.0
    %399 = vmatprep.subr.mxu0 0.0
    %400 = vmatpush1.msra.mxu0 0.0
    %401 = vmatprep.subr.mxu0 0.0
    %402 = vmatpush1.msra.mxu0 0.0
    %403 = vmatprep.subr.mxu0 0.0
    %404 = vmatpush1.msra.mxu0 0.0
    %405 = vmatprep.subr.mxu0 0.0
    %406 = vmatpush1.msra.mxu0 0.0
    %407 = vmatprep.subr.mxu0 0.0
    %408 = vmatpush1.msra.mxu0 0.0
    %409 = vmatprep.subr.mxu0 0.0
    %410 = vmatpush1.msra.mxu0 0.0
    %411 = vmatprep.mubr.f32.mxu0 0.0
    %412 = vmatmul.mubr.f32.gmra.mrb[0].mxu0 %v342
    %v413 = vpop.f32.mrb[0].mxu0
    %v414 = vadd.f32 0.0, %v413
    %v415 = vpop.f32.mrb[0].mxu0
    %416 = vmatprep.mubr.f32.mxu0 0.0
    %417 = vmatmul.mubr.f32.gmra.mrb[0].mxu0 %v345
    %v418 = vpop.f32.mrb[0].mxu0
    %v419 = vadd.f32 0.0, %v418
    %v420 = vpop.f32.mrb[0].mxu0
    %421 = vdwg.mxu0
    %422 = vrot.lane.b32.xlu0 %v210, 120
    %v423 = vpop.permute.xlu0 %422
    %424 = vrot.lane.b32.xlu0 %v215, 120
    %v425 = vpop.permute.xlu0 %424
    %426 = vrot.lane.b32.xlu0 %v210, 88
    %v427 = vpop.permute.xlu0 %426
    %428 = vrot.lane.b32.xlu0 %v215, 88
    %v429 = vpop.permute.xlu0 %428
    %v430 = vsel %vm224, %v423, 0
    %v432 = vsel %vm224, %v425, 0
    %v434 = vsel %vm224, %v427, 0
    %v436 = vsel %vm224, %v429, 0
    %438 = vmatprep.subr.mxu0 0.0
    %439 = vmatpush1.xpose.msra.mxu0 %v434
    %440 = vmatprep.subr.mxu0 0.0
    %441 = vmatpush1.xpose.msra.mxu0 %v436
    %442 = vmatprep.subr.mxu0 0.0
    %443 = vmatpush1.xpose.msra.mxu0 0.0
    %444 = vmatprep.subr.mxu0 0.0
    %445 = vmatpush1.xpose.msra.mxu0 0.0
    %446 = vmatprep.subr.mxu0 0.0
    %447 = vmatpush1.xpose.msra.mxu0 0.0
    %448 = vmatprep.subr.mxu0 0.0
    %449 = vmatpush1.xpose.msra.mxu0 0.0
    %450 = vmatprep.subr.mxu0 0.0
    %451 = vmatpush1.xpose.msra.mxu0 0.0
    %452 = vmatprep.subr.mxu0 0.0
    %453 = vmatpush1.xpose.msra.mxu0 0.0
    %454 = vmatprep.subr.mxu0 0.0
    %455 = vmatpush1.xpose.msra.mxu0 0.0
    %456 = vmatprep.subr.mxu0 0.0
    %457 = vmatpush1.xpose.msra.mxu0 0.0
    %458 = vmatprep.subr.mxu0 0.0
    %459 = vmatpush1.xpose.msra.mxu0 0.0
    %460 = vmatprep.subr.mxu0 0.0
    %461 = vmatpush1.xpose.msra.mxu0 0.0
    %462 = vmatprep.subr.mxu0 0.0
    %463 = vmatpush1.xpose.msra.mxu0 0.0
    %464 = vmatprep.subr.mxu0 0.0
    %465 = vmatpush1.xpose.msra.mxu0 0.0
    %466 = vmatprep.subr.mxu0 0.0
    %467 = vmatpush1.xpose.msra.mxu0 0.0
    %468 = vmatprep.subr.mxu0 0.0
    %469 = vmatpush1.xpose.msra.mxu0 0.0
    %470 = vmatprep.subr.mxu0 0.0
    %471 = vmatpush1.xpose.msra.mxu0 0.0
    %472 = vmatprep.subr.mxu0 0.0
    %473 = vmatpush1.xpose.msra.mxu0 0.0
    %474 = vmatprep.subr.mxu0 0.0
    %475 = vmatpush1.xpose.msra.mxu0 0.0
    %476 = vmatprep.subr.mxu0 0.0
    %477 = vmatpush1.xpose.msra.mxu0 0.0
    %478 = vmatprep.subr.mxu0 0.0
    %479 = vmatpush1.xpose.msra.mxu0 0.0
    %480 = vmatprep.subr.mxu0 0.0
    %481 = vmatpush1.xpose.msra.mxu0 0.0
    %482 = vmatprep.subr.mxu0 0.0
    %483 = vmatpush1.xpose.msra.mxu0 0.0
    %484 = vmatprep.subr.mxu0 0.0
    %485 = vmatpush1.xpose.msra.mxu0 0.0
    %486 = vmatprep.subr.mxu0 0.0
    %487 = vmatpush1.xpose.msra.mxu0 0.0
    %488 = vmatprep.subr.mxu0 0.0
    %489 = vmatpush1.xpose.msra.mxu0 0.0
    %490 = vmatprep.subr.mxu0 0.0
    %491 = vmatpush1.xpose.msra.mxu0 0.0
    %492 = vmatprep.subr.mxu0 0.0
    %493 = vmatpush1.xpose.msra.mxu0 0.0
    %494 = vmatprep.subr.mxu0 0.0
    %495 = vmatpush1.xpose.msra.mxu0 0.0
    %496 = vmatprep.subr.mxu0 0.0
    %497 = vmatpush1.xpose.msra.mxu0 0.0
    %498 = vmatprep.subr.mxu0 0.0
    %499 = vmatpush1.xpose.msra.mxu0 0.0
    %500 = vmatprep.subr.mxu0 0.0
    %501 = vmatpush1.xpose.msra.mxu0 0.0
    %502 = vmatprep.mubr.f32.mxu0 0.0
    %503 = vmatmul.mubr.f32.gmra.mrb[0].mxu0 %v430
    %v504 = vpop.f32.mrb[0].mxu0
    %v505 = vadd.f32 0.0, %v504
    %v506 = vpop.f32.mrb[0].mxu0
    %507 = vmatprep.mubr.f32.mxu0 0.0
    %508 = vmatmul.mubr.f32.gmra.mrb[0].mxu0 %v432
    %v509 = vpop.f32.mrb[0].mxu0
    %v510 = vadd.f32 0.0, %v509
    %v511 = vpop.f32.mrb[0].mxu0
    %512 = vdwg.mxu0
    %v513 = vmul.f32 %v505, 0.35355338
    %v514 = vmul.f32 %v510, 0.35355338
    %v515 = vadd.f32 %v513, %v81
    %v516 = vadd.f32 %v514, %v82
    %v517 = vsel %vm312, %v515, -inf
    %518 = vmax.xlane.f32.xlu0 %v517
    %v519 = vpop.xlane.xlu0 %518
    %v520 = vsel %vm312, %v516, -inf
    %521 = vmax.xlane.f32.xlu0 %v520
    %v522 = vpop.xlane.xlu0 %521
    %v523 = vsub.f32 %v515, %v519
    %v524 = vsub.f32 %v516, %v522
    %v525 = vmul.f32 %v523, 1.442695
    %v526 = vpow.pop %v525
    %v527 = vmul.f32 %v524, 1.442695
    %v528 = vpow.pop %v527
    %v529 = vsel %vm312, %v526, 0.0
    %530 = vadd.xlane.f32.xlu0 %v529
    %v531 = vpop.xlane.xlu0 %530
    %v532 = vsel %vm312, %v528, 0.0
    %533 = vadd.xlane.f32.xlu0 %v532
    %v534 = vpop.xlane.xlu0 %533
    %v535 = vrcp.pop %v531
    %v536 = vmul.f32 %v526, %v535
    %v537 = vrcp.pop %v534
    %v538 = vmul.f32 %v528, %v537
    %539 = vrot.lane.b32.xlu0 %v210, 56
    %v540 = vpop.permute.xlu0 %539
    %541 = vrot.lane.b32.xlu0 %v215, 56
    %v542 = vpop.permute.xlu0 %541
    %v546 = vsel %vm312, %v536, 0
    %v549 = vsel %vm312, %v538, 0
    %551 = vmatprep.subr.mxu0 0.0
    %552 = vmatpush1.msra.mxu0 %v540
    %553 = vmatprep.subr.mxu0 0.0
    %554 = vmatpush1.msra.mxu0 %v542
    %555 = vmatprep.subr.mxu0 0.0
    %556 = vmatpush1.msra.mxu0 0.0
    %557 = vmatprep.subr.mxu0 0.0
    %558 = vmatpush1.msra.mxu0 0.0
    %559 = vmatprep.subr.mxu0 0.0
    %560 = vmatpush1.msra.mxu0 0.0
    %561 = vmatprep.subr.mxu0 0.0
    %562 = vmatpush1.msra.mxu0 0.0
    %563 = vmatprep.subr.mxu0 0.0
    %564 = vmatpush1.msra.mxu0 0.0
    %565 = vmatprep.subr.mxu0 0.0
    %566 = vmatpush1.msra.mxu0 0.0
    %567 = vmatprep.subr.mxu0 0.0
    %568 = vmatpush1.msra.mxu0 0.0
    %569 = vmatprep.subr.mxu0 0.0
    %570 = vmatpush1.msra.mxu0 0.0
    %571 = vmatprep.subr.mxu0 0.0
    %572 = vmatpush1.msra.mxu0 0.0
    %573 = vmatprep.subr.mxu0 0.0
    %574 = vmatpush1.msra.mxu0 0.0
    %575 = vmatprep.subr.mxu0 0.0
    %576 = vmatpush1.msra.mxu0 0.0
    %577 = vmatprep.subr.mxu0 0.0
    %578 = vmatpush1.msra.mxu0 0.0
    %579 = vmatprep.subr.mxu0 0.0
    %580 = vmatpush1.msra.mxu0 0.0
    %581 = vmatprep.subr.mxu0 0.0
    %582 = vmatpush1.msra.mxu0 0.0
    %583 = vmatprep.subr.mxu0 0.0
    %584 = vmatpush1.msra.mxu0 0.0
    %585 = vmatprep.subr.mxu0 0.0
    %586 = vmatpush1.msra.mxu0 0.0
    %587 = vmatprep.subr.mxu0 0.0
    %588 = vmatpush1.msra.mxu0 0.0
    %589 = vmatprep.subr.mxu0 0.0
    %590 = vmatpush1.msra.mxu0 0.0
    %591 = vmatprep.subr.mxu0 0.0
    %592 = vmatpush1.msra.mxu0 0.0
    %593 = vmatprep.subr.mxu0 0.0
    %594 = vmatpush1.msra.mxu0 0.0
    %595 = vmatprep.subr.mxu0 0.0
    %596 = vmatpush1.msra.mxu0 0.0
    %597 = vmatprep.subr.mxu0 0.0
    %598 = vmatpush1.msra.mxu0 0.0
    %599 = vmatprep.subr.mxu0 0.0
    %600 = vmatpush1.msra.mxu0 0.0
    %601 = vmatprep.subr.mxu0 0.0
    %602 = vmatpush1.msra.mxu0 0.0
    %603 = vmatprep.subr.mxu0 0.0
    %604 = vmatpush1.msra.mxu0 0.0
    %605 = vmatprep.subr.mxu0 0.0
    %606 = vmatpush1.msra.mxu0 0.0
    %607 = vmatprep.subr.mxu0 0.0
    %608 = vmatpush1.msra.mxu0 0.0
    %609 = vmatprep.subr.mxu0 0.0
    %610 = vmatpush1.msra.mxu0 0.0
    %611 = vmatprep.subr.mxu0 0.0
    %612 = vmatpush1.msra.mxu0 0.0
    %613 = vmatprep.subr.mxu0 0.0
    %614 = vmatpush1.msra.mxu0 0.0
    %615 = vmatprep.mubr.f32.mxu0 0.0
    %616 = vmatmul.mubr.f32.gmra.mrb[0].mxu0 %v546
    %v617 = vpop.f32.mrb[0].mxu0
    %v618 = vadd.f32 0.0, %v617
    %v619 = vpop.f32.mrb[0].mxu0
    %620 = vmatprep.mubr.f32.mxu0 0.0
    %621 = vmatmul.mubr.f32.gmra.mrb[0].mxu0 %v549
    %v622 = vpop.f32.mrb[0].mxu0
    %v623 = vadd.f32 0.0, %v622
    %v624 = vpop.f32.mrb[0].mxu0
    %625 = vdwg.mxu0
    %626 = vrot.lane.b32.xlu0 %v210, 112
    %v627 = vpop.permute.xlu0 %626
    %628 = vrot.lane.b32.xlu0 %v215, 112
    %v629 = vpop.permute.xlu0 %628
    %630 = vrot.lane.b32.xlu0 %v210, 80
    %v631 = vpop.permute.xlu0 %630
    %632 = vrot.lane.b32.xlu0 %v215, 80
    %v633 = vpop.permute.xlu0 %632
    %v634 = vsel %vm224, %v627, 0
    %v636 = vsel %vm224, %v629, 0
    %v638 = vsel %vm224, %v631, 0
    %v640 = vsel %vm224, %v633, 0
    %642 = vmatprep.subr.mxu0 0.0
    %643 = vmatpush1.xpose.msra.mxu0 %v638
    %644 = vmatprep.subr.mxu0 0.0
    %645 = vmatpush1.xpose.msra.mxu0 %v640
    %646 = vmatprep.subr.mxu0 0.0
    %647 = vmatpush1.xpose.msra.mxu0 0.0
    %648 = vmatprep.subr.mxu0 0.0
    %649 = vmatpush1.xpose.msra.mxu0 0.0
    %650 = vmatprep.subr.mxu0 0.0
    %651 = vmatpush1.xpose.msra.mxu0 0.0
    %652 = vmatprep.subr.mxu0 0.0
    %653 = vmatpush1.xpose.msra.mxu0 0.0
    %654 = vmatprep.subr.mxu0 0.0
    %655 = vmatpush1.xpose.msra.mxu0 0.0
    %656 = vmatprep.subr.mxu0 0.0
    %657 = vmatpush1.xpose.msra.mxu0 0.0
    %658 = vmatprep.subr.mxu0 0.0
    %659 = vmatpush1.xpose.msra.mxu0 0.0
    %660 = vmatprep.subr.mxu0 0.0
    %661 = vmatpush1.xpose.msra.mxu0 0.0
    %662 = vmatprep.subr.mxu0 0.0
    %663 = vmatpush1.xpose.msra.mxu0 0.0
    %664 = vmatprep.subr.mxu0 0.0
    %665 = vmatpush1.xpose.msra.mxu0 0.0
    %666 = vmatprep.subr.mxu0 0.0
    %667 = vmatpush1.xpose.msra.mxu0 0.0
    %668 = vmatprep.subr.mxu0 0.0
    %669 = vmatpush1.xpose.msra.mxu0 0.0
    %670 = vmatprep.subr.mxu0 0.0
    %671 = vmatpush1.xpose.msra.mxu0 0.0
    %672 = vmatprep.subr.mxu0 0.0
    %673 = vmatpush1.xpose.msra.mxu0 0.0
    %674 = vmatprep.subr.mxu0 0.0
    %675 = vmatpush1.xpose.msra.mxu0 0.0
    %676 = vmatprep.subr.mxu0 0.0
    %677 = vmatpush1.xpose.msra.mxu0 0.0
    %678 = vmatprep.subr.mxu0 0.0
    %679 = vmatpush1.xpose.msra.mxu0 0.0
    %680 = vmatprep.subr.mxu0 0.0
    %681 = vmatpush1.xpose.msra.mxu0 0.0
    %682 = vmatprep.subr.mxu0 0.0
    %683 = vmatpush1.xpose.msra.mxu0 0.0
    %684 = vmatprep.subr.mxu0 0.0
    %685 = vmatpush1.xpose.msra.mxu0 0.0
    %686 = vmatprep.subr.mxu0 0.0
    %687 = vmatpush1.xpose.msra.mxu0 0.0
    %688 = vmatprep.subr.mxu0 0.0
    %689 = vmatpush1.xpose.msra.mxu0 0.0
    %690 = vmatprep.subr.mxu0 0.0
    %691 = vmatpush1.xpose.msra.mxu0 0.0
    %692 = vmatprep.subr.mxu0 0.0
    %693 = vmatpush1.xpose.msra.mxu0 0.0
    %694 = vmatprep.subr.mxu0 0.0
    %695 = vmatpush1.xpose.msra.mxu0 0.0
    %696 = vmatprep.subr.mxu0 0.0
    %697 = vmatpush1.xpose.msra.mxu0 0.0
    %698 = vmatprep.subr.mxu0 0.0
    %699 = vmatpush1.xpose.msra.mxu0 0.0
    %700 = vmatprep.subr.mxu0 0.0
    %701 = vmatpush1.xpose.msra.mxu0 0.0
    %702 = vmatprep.subr.mxu0 0.0
    %703 = vmatpush1.xpose.msra.mxu0 0.0
    %704 = vmatprep.subr.mxu0 0.0
    %705 = vmatpush1.xpose.msra.mxu0 0.0
    %706 = vmatprep.mubr.f32.mxu0 0.0
    %707 = vmatmul.mubr.f32.gmra.mrb[0].mxu0 %v634
    %v708 = vpop.f32.mrb[0].mxu0
    %v709 = vadd.f32 0.0, %v708
    %v710 = vpop.f32.mrb[0].mxu0
    %711 = vmatprep.mubr.f32.mxu0 0.0
    %712 = vmatmul.mubr.f32.gmra.mrb[0].mxu0 %v636
    %v713 = vpop.f32.mrb[0].mxu0
    %v714 = vadd.f32 0.0, %v713
    %v715 = vpop.f32.mrb[0].mxu0
    %716 = vdwg.mxu0
    %v717 = vmul.f32 %v709, 0.35355338
    %v718 = vmul.f32 %v714, 0.35355338
    %v719 = vadd.f32 %v717, %v81
    %v720 = vadd.f32 %v718, %v82
    %v721 = vsel %vm312, %v719, -inf
    %722 = vmax.xlane.f32.xlu0 %v721
    %v723 = vpop.xlane.xlu0 %722
    %v724 = vsel %vm312, %v720, -inf
    %725 = vmax.xlane.f32.xlu0 %v724
    %v726 = vpop.xlane.xlu0 %725
    %v727 = vsub.f32 %v719, %v723
    %v728 = vsub.f32 %v720, %v726
    %v729 = vmul.f32 %v727, 1.442695
    %v730 = vpow.pop %v729
    %v731 = vmul.f32 %v728, 1.442695
    %v732 = vpow.pop %v731
    %v733 = vsel %vm312, %v730, 0.0
    %734 = vadd.xlane.f32.xlu0 %v733
    %v735 = vpop.xlane.xlu0 %734
    %v736 = vsel %vm312, %v732, 0.0
    %737 = vadd.xlane.f32.xlu0 %v736
    %v738 = vpop.xlane.xlu0 %737
    %v739 = vrcp.pop %v735
    %v740 = vmul.f32 %v730, %v739
    %v741 = vrcp.pop %v738
    %v742 = vmul.f32 %v732, %v741
    %743 = vrot.lane.b32.xlu0 %v210, 48
    %v744 = vpop.permute.xlu0 %743
    %745 = vrot.lane.b32.xlu0 %v215, 48
    %v746 = vpop.permute.xlu0 %745
    %v750 = vsel %vm312, %v740, 0
    %v753 = vsel %vm312, %v742, 0
    %755 = vmatprep.subr.mxu0 0.0
    %756 = vmatpush1.msra.mxu0 %v744
    %757 = vmatprep.subr.mxu0 0.0
    %758 = vmatpush1.msra.mxu0 %v746
    %759 = vmatprep.subr.mxu0 0.0
    %760 = vmatpush1.msra.mxu0 0.0
    %761 = vmatprep.subr.mxu0 0.0
    %762 = vmatpush1.msra.mxu0 0.0
    %763 = vmatprep.subr.mxu0 0.0
    %764 = vmatpush1.msra.mxu0 0.0
    %765 = vmatprep.subr.mxu0 0.0
    %766 = vmatpush1.msra.mxu0 0.0
    %767 = vmatprep.subr.mxu0 0.0
    %768 = vmatpush1.msra.mxu0 0.0
    %769 = vmatprep.subr.mxu0 0.0
    %770 = vmatpush1.msra.mxu0 0.0
    %771 = vmatprep.subr.mxu0 0.0
    %772 = vmatpush1.msra.mxu0 0.0
    %773 = vmatprep.subr.mxu0 0.0
    %774 = vmatpush1.msra.mxu0 0.0
    %775 = vmatprep.subr.mxu0 0.0
    %776 = vmatpush1.msra.mxu0 0.0
    %777 = vmatprep.subr.mxu0 0.0
    %778 = vmatpush1.msra.mxu0 0.0
    %779 = vmatprep.subr.mxu0 0.0
    %780 = vmatpush1.msra.mxu0 0.0
    %781 = vmatprep.subr.mxu0 0.0
    %782 = vmatpush1.msra.mxu0 0.0
    %783 = vmatprep.subr.mxu0 0.0
    %784 = vmatpush1.msra.mxu0 0.0
    %785 = vmatprep.subr.mxu0 0.0
    %786 = vmatpush1.msra.mxu0 0.0
    %787 = vmatprep.subr.mxu0 0.0
    %788 = vmatpush1.msra.mxu0 0.0
    %789 = vmatprep.subr.mxu0 0.0
    %790 = vmatpush1.msra.mxu0 0.0
    %791 = vmatprep.subr.mxu0 0.0
    %792 = vmatpush1.msra.mxu0 0.0
    %793 = vmatprep.subr.mxu0 0.0
    %794 = vmatpush1.msra.mxu0 0.0
    %795 = vmatprep.subr.mxu0 0.0
    %796 = vmatpush1.msra.mxu0 0.0
    %797 = vmatprep.subr.mxu0 0.0
    %798 = vmatpush1.msra.mxu0 0.0
    %799 = vmatprep.subr.mxu0 0.0
    %800 = vmatpush1.msra.mxu0 0.0
    %801 = vmatprep.subr.mxu0 0.0
    %802 = vmatpush1.msra.mxu0 0.0
    %803 = vmatprep.subr.mxu0 0.0
    %804 = vmatpush1.msra.mxu0 0.0
    %805 = vmatprep.subr.mxu0 0.0
    %806 = vmatpush1.msra.mxu0 0.0
    %807 = vmatprep.subr.mxu0 0.0
    %808 = vmatpush1.msra.mxu0 0.0
    %809 = vmatprep.subr.mxu0 0.0
    %810 = vmatpush1.msra.mxu0 0.0
    %811 = vmatprep.subr.mxu0 0.0
    %812 = vmatpush1.msra.mxu0 0.0
    %813 = vmatprep.subr.mxu0 0.0
    %814 = vmatpush1.msra.mxu0 0.0
    %815 = vmatprep.subr.mxu0 0.0
    %816 = vmatpush1.msra.mxu0 0.0
    %817 = vmatprep.subr.mxu0 0.0
    %818 = vmatpush1.msra.mxu0 0.0
    %819 = vmatprep.mubr.f32.mxu0 0.0
    %820 = vmatmul.mubr.f32.gmra.mrb[0].mxu0 %v750
    %v821 = vpop.f32.mrb[0].mxu0
    %v822 = vadd.f32 0.0, %v821
    %v823 = vpop.f32.mrb[0].mxu0
    %824 = vmatprep.mubr.f32.mxu0 0.0
    %825 = vmatmul.mubr.f32.gmra.mrb[0].mxu0 %v753
    %v826 = vpop.f32.mrb[0].mxu0
    %v827 = vadd.f32 0.0, %v826
    %v828 = vpop.f32.mrb[0].mxu0
    %829 = vdwg.mxu0
    %830 = vrot.lane.b32.xlu0 %v210, 104
    %v831 = vpop.permute.xlu0 %830
    %832 = vrot.lane.b32.xlu0 %v215, 104
    %v833 = vpop.permute.xlu0 %832
    %834 = vrot.lane.b32.xlu0 %v210, 72
    %v835 = vpop.permute.xlu0 %834
    %836 = vrot.lane.b32.xlu0 %v215, 72
    %v837 = vpop.permute.xlu0 %836
    %v838 = vsel %vm224, %v831, 0
    %v840 = vsel %vm224, %v833, 0
    %v842 = vsel %vm224, %v835, 0
    %v844 = vsel %vm224, %v837, 0
    %846 = vmatprep.subr.mxu0 0.0
    %847 = vmatpush1.xpose.msra.mxu0 %v842
    %848 = vmatprep.subr.mxu0 0.0
    %849 = vmatpush1.xpose.msra.mxu0 %v844
    %850 = vmatprep.subr.mxu0 0.0
    %851 = vmatpush1.xpose.msra.mxu0 0.0
    %852 = vmatprep.subr.mxu0 0.0
    %853 = vmatpush1.xpose.msra.mxu0 0.0
    %854 = vmatprep.subr.mxu0 0.0
    %855 = vmatpush1.xpose.msra.mxu0 0.0
    %856 = vmatprep.subr.mxu0 0.0
    %857 = vmatpush1.xpose.msra.mxu0 0.0
    %858 = vmatprep.subr.mxu0 0.0
    %859 = vmatpush1.xpose.msra.mxu0 0.0
    %860 = vmatprep.subr.mxu0 0.0
    %861 = vmatpush1.xpose.msra.mxu0 0.0
    %862 = vmatprep.subr.mxu0 0.0
    %863 = vmatpush1.xpose.msra.mxu0 0.0
    %864 = vmatprep.subr.mxu0 0.0
    %865 = vmatpush1.xpose.msra.mxu0 0.0
    %866 = vmatprep.subr.mxu0 0.0
    %867 = vmatpush1.xpose.msra.mxu0 0.0
    %868 = vmatprep.subr.mxu0 0.0
    %869 = vmatpush1.xpose.msra.mxu0 0.0
    %870 = vmatprep.subr.mxu0 0.0
    %871 = vmatpush1.xpose.msra.mxu0 0.0
    %872 = vmatprep.subr.mxu0 0.0
    %873 = vmatpush1.xpose.msra.mxu0 0.0
    %874 = vmatprep.subr.mxu0 0.0
    %875 = vmatpush1.xpose.msra.mxu0 0.0
    %876 = vmatprep.subr.mxu0 0.0
    %877 = vmatpush1.xpose.msra.mxu0 0.0
    %878 = vmatprep.subr.mxu0 0.0
    %879 = vmatpush1.xpose.msra.mxu0 0.0
    %880 = vmatprep.subr.mxu0 0.0
    %881 = vmatpush1.xpose.msra.mxu0 0.0
    %882 = vmatprep.subr.mxu0 0.0
    %883 = vmatpush1.xpose.msra.mxu0 0.0
    %884 = vmatprep.subr.mxu0 0.0
    %885 = vmatpush1.xpose.msra.mxu0 0.0
    %886 = vmatprep.subr.mxu0 0.0
    %887 = vmatpush1.xpose.msra.mxu0 0.0
    %888 = vmatprep.subr.mxu0 0.0
    %889 = vmatpush1.xpose.msra.mxu0 0.0
    %890 = vmatprep.subr.mxu0 0.0
    %891 = vmatpush1.xpose.msra.mxu0 0.0
    %892 = vmatprep.subr.mxu0 0.0
    %893 = vmatpush1.xpose.msra.mxu0 0.0
    %894 = vmatprep.subr.mxu0 0.0
    %895 = vmatpush1.xpose.msra.mxu0 0.0
    %896 = vmatprep.subr.mxu0 0.0
    %897 = vmatpush1.xpose.msra.mxu0 0.0
    %898 = vmatprep.subr.mxu0 0.0
    %899 = vmatpush1.xpose.msra.mxu0 0.0
    %900 = vmatprep.subr.mxu0 0.0
    %901 = vmatpush1.xpose.msra.mxu0 0.0
    %902 = vmatprep.subr.mxu0 0.0
    %903 = vmatpush1.xpose.msra.mxu0 0.0
    %904 = vmatprep.subr.mxu0 0.0
    %905 = vmatpush1.xpose.msra.mxu0 0.0
    %906 = vmatprep.subr.mxu0 0.0
    %907 = vmatpush1.xpose.msra.mxu0 0.0
    %908 = vmatprep.subr.mxu0 0.0
    %909 = vmatpush1.xpose.msra.mxu0 0.0
    %910 = vmatprep.mubr.f32.mxu0 0.0
    %911 = vmatmul.mubr.f32.gmra.mrb[0].mxu0 %v838
    %v912 = vpop.f32.mrb[0].mxu0
    %v913 = vadd.f32 0.0, %v912
    %v914 = vpop.f32.mrb[0].mxu0
    %915 = vmatprep.mubr.f32.mxu0 0.0
    %916 = vmatmul.mubr.f32.gmra.mrb[0].mxu0 %v840
    %v917 = vpop.f32.mrb[0].mxu0
    %v918 = vadd.f32 0.0, %v917
    %v919 = vpop.f32.mrb[0].mxu0
    %920 = vdwg.mxu0
    %v921 = vmul.f32 %v913, 0.35355338
    %v922 = vmul.f32 %v918, 0.35355338
    %v923 = vadd.f32 %v921, %v81
    %v924 = vadd.f32 %v922, %v82
    %v925 = vsel %vm312, %v923, -inf
    %926 = vmax.xlane.f32.xlu0 %v925
    %v927 = vpop.xlane.xlu0 %926
    %v928 = vsel %vm312, %v924, -inf
    %929 = vmax.xlane.f32.xlu0 %v928
    %v930 = vpop.xlane.xlu0 %929
    %v931 = vsub.f32 %v923, %v927
    %v932 = vsub.f32 %v924, %v930
    %v933 = vmul.f32 %v931, 1.442695
    %v934 = vpow.pop %v933
    %v935 = vmul.f32 %v932, 1.442695
    %v936 = vpow.pop %v935
    %v937 = vsel %vm312, %v934, 0.0
    %938 = vadd.xlane.f32.xlu0 %v937
    %v939 = vpop.xlane.xlu0 %938
    %v940 = vsel %vm312, %v936, 0.0
    %941 = vadd.xlane.f32.xlu0 %v940
    %v942 = vpop.xlane.xlu0 %941
    %v943 = vrcp.pop %v939
    %v944 = vmul.f32 %v934, %v943
    %v945 = vrcp.pop %v942
    %v946 = vmul.f32 %v936, %v945
    %947 = vrot.lane.b32.xlu0 %v210, 40
    %v948 = vpop.permute.xlu0 %947
    %949 = vrot.lane.b32.xlu0 %v215, 40
    %v950 = vpop.permute.xlu0 %949
    %v954 = vsel %vm312, %v944, 0
    %v957 = vsel %vm312, %v946, 0
    %959 = vmatprep.subr.mxu0 0.0
    %960 = vmatpush1.msra.mxu0 %v948
    %961 = vmatprep.subr.mxu0 0.0
    %962 = vmatpush1.msra.mxu0 %v950
    %963 = vmatprep.subr.mxu0 0.0
    %964 = vmatpush1.msra.mxu0 0.0
    %965 = vmatprep.subr.mxu0 0.0
    %966 = vmatpush1.msra.mxu0 0.0
    %967 = vmatprep.subr.mxu0 0.0
    %968 = vmatpush1.msra.mxu0 0.0
    %969 = vmatprep.subr.mxu0 0.0
    %970 = vmatpush1.msra.mxu0 0.0
    %971 = vmatprep.subr.mxu0 0.0
    %972 = vmatpush1.msra.mxu0 0.0
    %973 = vmatprep.subr.mxu0 0.0
    %974 = vmatpush1.msra.mxu0 0.0
    %975 = vmatprep.subr.mxu0 0.0
    %976 = vmatpush1.msra.mxu0 0.0
    %977 = vmatprep.subr.mxu0 0.0
    %978 = vmatpush1.msra.mxu0 0.0
    %979 = vmatprep.subr.mxu0 0.0
    %980 = vmatpush1.msra.mxu0 0.0
    %981 = vmatprep.subr.mxu0 0.0
    %982 = vmatpush1.msra.mxu0 0.0
    %983 = vmatprep.subr.mxu0 0.0
    %984 = vmatpush1.msra.mxu0 0.0
    %985 = vmatprep.subr.mxu0 0.0
    %986 = vmatpush1.msra.mxu0 0.0
    %987 = vmatprep.subr.mxu0 0.0
    %988 = vmatpush1.msra.mxu0 0.0
    %989 = vmatprep.subr.mxu0 0.0
    %990 = vmatpush1.msra.mxu0 0.0
    %991 = vmatprep.subr.mxu0 0.0
    %992 = vmatpush1.msra.mxu0 0.0
    %993 = vmatprep.subr.mxu0 0.0
    %994 = vmatpush1.msra.mxu0 0.0
    %995 = vmatprep.subr.mxu0 0.0
    %996 = vmatpush1.msra.mxu0 0.0
    %997 = vmatprep.subr.mxu0 0.0
    %998 = vmatpush1.msra.mxu0 0.0
    %999 = vmatprep.subr.mxu0 0.0
    %1000 = vmatpush1.msra.mxu0 0.0
    %1001 = vmatprep.subr.mxu0 0.0
    %1002 = vmatpush1.msra.mxu0 0.0
    %1003 = vmatprep.subr.mxu0 0.0
    %1004 = vmatpush1.msra.mxu0 0.0
    %1005 = vmatprep.subr.mxu0 0.0
    %1006 = vmatpush1.msra.mxu0 0.0
    %1007 = vmatprep.subr.mxu0 0.0
    %1008 = vmatpush1.msra.mxu0 0.0
    %1009 = vmatprep.subr.mxu0 0.0
    %1010 = vmatpush1.msra.mxu0 0.0
    %1011 = vmatprep.subr.mxu0 0.0
    %1012 = vmatpush1.msra.mxu0 0.0
    %1013 = vmatprep.subr.mxu0 0.0
    %1014 = vmatpush1.msra.mxu0 0.0
    %1015 = vmatprep.subr.mxu0 0.0
    %1016 = vmatpush1.msra.mxu0 0.0
    %1017 = vmatprep.subr.mxu0 0.0
    %1018 = vmatpush1.msra.mxu0 0.0
    %1019 = vmatprep.subr.mxu0 0.0
    %1020 = vmatpush1.msra.mxu0 0.0
    %1021 = vmatprep.subr.mxu0 0.0
    %1022 = vmatpush1.msra.mxu0 0.0
    %1023 = vmatprep.mubr.f32.mxu0 0.0
    %1024 = vmatmul.mubr.f32.gmra.mrb[0].mxu0 %v954
    %v1025 = vpop.f32.mrb[0].mxu0
    %v1026 = vadd.f32 0.0, %v1025
    %v1027 = vpop.f32.mrb[0].mxu0
    %1028 = vmatprep.mubr.f32.mxu0 0.0
    %1029 = vmatmul.mubr.f32.gmra.mrb[0].mxu0 %v957
    %v1030 = vpop.f32.mrb[0].mxu0
    %v1031 = vadd.f32 0.0, %v1030
    %v1032 = vpop.f32.mrb[0].mxu0
    %1033 = vdwg.mxu0
    %1036 = vrot.lane.b32.xlu0 %v618, 8
    %v1037 = vpop.permute.xlu0 %1036
    %1038 = vrot.lane.b32.xlu0 %v623, 8
    %v1039 = vpop.permute.xlu0 %1038
    %1044 = vrot.lane.b32.xlu0 %v822, 16
    %v1045 = vpop.permute.xlu0 %1044
    %1046 = vrot.lane.b32.xlu0 %v827, 16
    %v1047 = vpop.permute.xlu0 %1046
    %1052 = vrot.lane.b32.xlu0 %v1026, 24
    %v1053 = vpop.permute.xlu0 %1052
    %1054 = vrot.lane.b32.xlu0 %v1031, 24
    %v1055 = vpop.permute.xlu0 %1054
    %v1058 = vsel %vm224, %v414, %v1037
    %v1059 = vsel %vm224, %v419, %v1039
    %v1060 = vsel %vm312, %v1058, %v1045
    %v1061 = vsel %vm312, %v1059, %v1047
    %vm1062 = vcmask 195584
    %v1063 = vsel %vm1062, %v1060, %v1053
    %v1064 = vsel %vm1062, %v1061, %v1055
    %1069 = vrot.lane.b32.xlu0 %v83, 32
    %v1070 = vpop.permute.xlu0 %1069
    %1071 = vrot.lane.b32.xlu0 %v84, 32
    %v1072 = vpop.permute.xlu0 %1071
    %1073 = vrot.lane.b32.xlu0 %v85, 32
    %v1074 = vpop.permute.xlu0 %1073
    %1075 = vrot.lane.b32.xlu0 %v86, 32
    %v1076 = vpop.permute.xlu0 %1075
    %1082 = vrot.lane.b32.xlu0 %v136, 32
    %v1083 = vpop.permute.xlu0 %1082
    %v1086 = vsel %vm93, %v1063, 0
    %v1089 = vsel %vm93, %v1064, 0
    %1091 = vmatprep.subr.mxu0 0.0
    %1092 = vmatpush1.msra.mxu0 %v1070
    %1093 = vmatprep.subr.mxu0 0.0
    %1094 = vmatpush1.msra.mxu0 %v1072
    %1095 = vmatprep.subr.mxu0 0.0
    %1096 = vmatpush1.msra.mxu0 %v1074
    %1097 = vmatprep.subr.mxu0 0.0
    %1098 = vmatpush1.msra.mxu0 %v1076
    %1099 = vmatprep.subr.mxu0 0.0
    %1100 = vmatpush1.msra.mxu0 0.0
    %1101 = vmatprep.subr.mxu0 0.0
    %1102 = vmatpush1.msra.mxu0 0.0
    %1103 = vmatprep.subr.mxu0 0.0
    %1104 = vmatpush1.msra.mxu0 0.0
    %1105 = vmatprep.subr.mxu0 0.0
    %1106 = vmatpush1.msra.mxu0 0.0
    %1107 = vmatprep.subr.mxu0 0.0
    %1108 = vmatpush1.msra.mxu0 0.0
    %1109 = vmatprep.subr.mxu0 0.0
    %1110 = vmatpush1.msra.mxu0 0.0
    %1111 = vmatprep.subr.mxu0 0.0
    %1112 = vmatpush1.msra.mxu0 0.0
    %1113 = vmatprep.subr.mxu0 0.0
    %1114 = vmatpush1.msra.mxu0 0.0
    %1115 = vmatprep.subr.mxu0 0.0
    %1116 = vmatpush1.msra.mxu0 0.0
    %1117 = vmatprep.subr.mxu0 0.0
    %1118 = vmatpush1.msra.mxu0 0.0
    %1119 = vmatprep.subr.mxu0 0.0
    %1120 = vmatpush1.msra.mxu0 0.0
    %1121 = vmatprep.subr.mxu0 0.0
    %1122 = vmatpush1.msra.mxu0 0.0
    %1123 = vmatprep.subr.mxu0 0.0
    %1124 = vmatpush1.msra.mxu0 0.0
    %1125 = vmatprep.subr.mxu0 0.0
    %1126 = vmatpush1.msra.mxu0 0.0
    %1127 = vmatprep.subr.mxu0 0.0
    %1128 = vmatpush1.msra.mxu0 0.0
    %1129 = vmatprep.subr.mxu0 0.0
    %1130 = vmatpush1.msra.mxu0 0.0
    %1131 = vmatprep.subr.mxu0 0.0
    %1132 = vmatpush1.msra.mxu0 0.0
    %1133 = vmatprep.subr.mxu0 0.0
    %1134 = vmatpush1.msra.mxu0 0.0
    %1135 = vmatprep.subr.mxu0 0.0
    %1136 = vmatpush1.msra.mxu0 0.0
    %1137 = vmatprep.subr.mxu0 0.0
    %1138 = vmatpush1.msra.mxu0 0.0
    %1139 = vmatprep.subr.mxu0 0.0
    %1140 = vmatpush1.msra.mxu0 0.0
    %1141 = vmatprep.subr.mxu0 0.0
    %1142 = vmatpush1.msra.mxu0 0.0
    %1143 = vmatprep.subr.mxu0 0.0
    %1144 = vmatpush1.msra.mxu0 0.0
    %1145 = vmatprep.subr.mxu0 0.0
    %1146 = vmatpush1.msra.mxu0 0.0
    %1147 = vmatprep.subr.mxu0 0.0
    %1148 = vmatpush1.msra.mxu0 0.0
    %1149 = vmatprep.subr.mxu0 0.0
    %1150 = vmatpush1.msra.mxu0 0.0
    %1151 = vmatprep.subr.mxu0 0.0
    %1152 = vmatpush1.msra.mxu0 0.0
    %1153 = vmatprep.subr.mxu0 0.0
    %1154 = vmatpush1.msra.mxu0 0.0
    %1155 = vmatprep.mubr.f32.mxu0 0.0
    %1156 = vmatmul.mubr.f32.gmra.mrb[0].mxu0 %v1086
    %v1157 = vpop.f32.mrb[0].mxu0
    %v1158 = vadd.f32 %v1083, %v1157
    %v1159 = vpop.f32.mrb[0].mxu0
    %1160 = vmatprep.mubr.f32.mxu0 0.0
    %1161 = vmatmul.mubr.f32.gmra.mrb[0].mxu0 %v1089
    %v1162 = vpop.f32.mrb[0].mxu0
    %v1163 = vadd.f32 %v1083, %v1162
    %v1164 = vpop.f32.mrb[0].mxu0
    %1165 = vdwg.mxu0
    %v1166 = vadd.f32 %v79, %v1158
    %v1167 = vadd.f32 %v80, %v1163
    %v1168 = vsel %vm93, %v1166, 0.0
    %1169 = vadd.xlane.f32.xlu0 %v1168
    %v1170 = vpop.xlane.xlu0 %1169
    %v1171 = vsel %vm93, %v1167, 0.0
    %1172 = vadd.xlane.f32.xlu0 %v1171
    %v1173 = vpop.xlane.xlu0 %1172
    %v1174 = vmul.f32 %v1170, %v100
    %v1175 = vmul.f32 %v1173, %v100
    %v1176 = vsub.f32 %v1166, %v1174
    %v1177 = vsub.f32 %v1167, %v1175
    %v1178 = vmul.f32 %v1176, %v1176
    %v1179 = vmul.f32 %v1177, %v1177
    %v1180 = vsel %vm93, %v1178, 0.0
    %1181 = vadd.xlane.f32.xlu0 %v1180
    %v1182 = vpop.xlane.xlu0 %1181
    %v1183 = vsel %vm93, %v1179, 0.0
    %1184 = vadd.xlane.f32.xlu0 %v1183
    %v1185 = vpop.xlane.xlu0 %1184
    %v1186 = vmul.f32 %v1182, %v100
    %v1187 = vmul.f32 %v1185, %v100
    %v1188 = vadd.f32 %v1186, 1e-06
    %v1189 = vadd.f32 %v1187, 1e-06
    %v1190 = vrsqrt.pop %v1188
    %v1191 = vrsqrt.pop %v1189
    %v1192 = vmul.f32 %v1176, %v1190
    %v1193 = vmul.f32 %v1177, %v1191
    %v1194 = vlaneseq
    %v1195 = vshrl.u32 %v1194, 7
    %v1196 = vsub.s32 2, %v1195
    %v1197 = vrot.slane %v92, %v1196
    %v1198 = vmul.f32 %v1192, %v1197
    %v1199 = vmul.f32 %v1193, %v1197
    %v1200 = vlaneseq
    %v1201 = vshrl.u32 %v1200, 7
    %v1202 = vsub.s32 3, %v1201
    %v1203 = vrot.slane %v92, %v1202
    %v1204 = vadd.f32 %v1198, %v1203
    %v1205 = vadd.f32 %v1199, %v1203
    %v1206 = vlaneseq
    %v1207 = vshrl.u32 %v1206, 7
    %v1208 = vsub.s32 1, %v1207
    %v1209 = vrot.slane %v91, %v1208
    %v1211 = vsel %vm93, %v1204, 0
    %v1214 = vsel %vm93, %v1205, 0
    %1216 = vmatprep.subr.mxu0 0.0
    %1217 = vmatpush1.msra.mxu0 %v87
    %1218 = vmatprep.subr.mxu0 0.0
    %1219 = vmatpush1.msra.mxu0 %v88
    %1220 = vmatprep.subr.mxu0 0.0
    %1221 = vmatpush1.msra.mxu0 %v89
    %1222 = vmatprep.subr.mxu0 0.0
    %1223 = vmatpush1.msra.mxu0 %v90
    %1224 = vmatprep.subr.mxu0 0.0
    %1225 = vmatpush1.msra.mxu0 0.0
    %1226 = vmatprep.subr.mxu0 0.0
    %1227 = vmatpush1.msra.mxu0 0.0
    %1228 = vmatprep.subr.mxu0 0.0
    %1229 = vmatpush1.msra.mxu0 0.0
    %1230 = vmatprep.subr.mxu0 0.0
    %1231 = vmatpush1.msra.mxu0 0.0
    %1232 = vmatprep.subr.mxu0 0.0
    %1233 = vmatpush1.msra.mxu0 0.0
    %1234 = vmatprep.subr.mxu0 0.0
    %1235 = vmatpush1.msra.mxu0 0.0
    %1236 = vmatprep.subr.mxu0 0.0
    %1237 = vmatpush1.msra.mxu0 0.0
    %1238 = vmatprep.subr.mxu0 0.0
    %1239 = vmatpush1.msra.mxu0 0.0
    %1240 = vmatprep.subr.mxu0 0.0
    %1241 = vmatpush1.msra.mxu0 0.0
    %1242 = vmatprep.subr.mxu0 0.0
    %1243 = vmatpush1.msra.mxu0 0.0
    %1244 = vmatprep.subr.mxu0 0.0
    %1245 = vmatpush1.msra.mxu0 0.0
    %1246 = vmatprep.subr.mxu0 0.0
    %1247 = vmatpush1.msra.mxu0 0.0
    %1248 = vmatprep.subr.mxu0 0.0
    %1249 = vmatpush1.msra.mxu0 0.0
    %1250 = vmatprep.subr.mxu0 0.0
    %1251 = vmatpush1.msra.mxu0 0.0
    %1252 = vmatprep.subr.mxu0 0.0
    %1253 = vmatpush1.msra.mxu0 0.0
    %1254 = vmatprep.subr.mxu0 0.0
    %1255 = vmatpush1.msra.mxu0 0.0
    %1256 = vmatprep.subr.mxu0 0.0
    %1257 = vmatpush1.msra.mxu0 0.0
    %1258 = vmatprep.subr.mxu0 0.0
    %1259 = vmatpush1.msra.mxu0 0.0
    %1260 = vmatprep.subr.mxu0 0.0
    %1261 = vmatpush1.msra.mxu0 0.0
    %1262 = vmatprep.subr.mxu0 0.0
    %1263 = vmatpush1.msra.mxu0 0.0
    %1264 = vmatprep.subr.mxu0 0.0
    %1265 = vmatpush1.msra.mxu0 0.0
    %1266 = vmatprep.subr.mxu0 0.0
    %1267 = vmatpush1.msra.mxu0 0.0
    %1268 = vmatprep.subr.mxu0 0.0
    %1269 = vmatpush1.msra.mxu0 0.0
    %1270 = vmatprep.subr.mxu0 0.0
    %1271 = vmatpush1.msra.mxu0 0.0
    %1272 = vmatprep.subr.mxu0 0.0
    %1273 = vmatpush1.msra.mxu0 0.0
    %1274 = vmatprep.subr.mxu0 0.0
    %1275 = vmatpush1.msra.mxu0 0.0
    %1276 = vmatprep.subr.mxu0 0.0
    %1277 = vmatpush1.msra.mxu0 0.0
    %1278 = vmatprep.subr.mxu0 0.0
    %1279 = vmatpush1.msra.mxu0 0.0
    %1280 = vmatprep.mubr.f32.mxu0 0.0
    %1281 = vmatmul.mubr.f32.gmra.mrb[0].mxu0 %v1211
    %v1282 = vpop.f32.mrb[0].mxu0
    %v1283 = vadd.f32 %v1209, %v1282
    %v1284 = vpop.f32.mrb[0].mxu0
    %1285 = vmatprep.mubr.f32.mxu0 0.0
    %1286 = vmatmul.mubr.f32.gmra.mrb[0].mxu0 %v1214
    %v1287 = vpop.f32.mrb[0].mxu0
    %v1288 = vadd.f32 %v1209, %v1287
    %v1289 = vpop.f32.mrb[0].mxu0
    %1290 = vdwg.mxu0
    %v1291 = vmax.f32 %v1283, 0.0
    %v1292 = vmax.f32 %v1288, 0.0
    %1297 = vrot.lane.b32.xlu0 %v87, 64
    %v1298 = vpop.permute.xlu0 %1297
    %1299 = vrot.lane.b32.xlu0 %v88, 64
    %v1300 = vpop.permute.xlu0 %1299
    %1301 = vrot.lane.b32.xlu0 %v89, 64
    %v1302 = vpop.permute.xlu0 %1301
    %1303 = vrot.lane.b32.xlu0 %v90, 64
    %v1304 = vpop.permute.xlu0 %1303
    %1306 = vrot.lane.b32.xlu0 %v1209, 64
    %v1307 = vpop.permute.xlu0 %1306
    %vm1309 = vcmask 523264
    %v1311 = vsel %vm1309, %v1291, 0
    %v1314 = vsel %vm1309, %v1292, 0
    %v1316 = vsel %vm1309, %v1298, 0
    %v1318 = vsel %vm1309, %v1300, 0
    %v1320 = vsel %vm1309, %v1302, 0
    %v1322 = vsel %vm1309, %v1304, 0
    %1324 = vmatprep.subr.mxu0 0.0
    %1325 = vmatpush1.xpose.msra.mxu0 %v1316
    %1326 = vmatprep.subr.mxu0 0.0
    %1327 = vmatpush1.xpose.msra.mxu0 %v1318
    %1328 = vmatprep.subr.mxu0 0.0
    %1329 = vmatpush1.xpose.msra.mxu0 %v1320
    %1330 = vmatprep.subr.mxu0 0.0
    %1331 = vmatpush1.xpose.msra.mxu0 %v1322
    %1332 = vmatprep.subr.mxu0 0.0
    %1333 = vmatpush1.xpose.msra.mxu0 0.0
    %1334 = vmatprep.subr.mxu0 0.0
    %1335 = vmatpush1.xpose.msra.mxu0 0.0
    %1336 = vmatprep.subr.mxu0 0.0
    %1337 = vmatpush1.xpose.msra.mxu0 0.0
    %1338 = vmatprep.subr.mxu0 0.0
    %1339 = vmatpush1.xpose.msra.mxu0 0.0
    %1340 = vmatprep.subr.mxu0 0.0
    %1341 = vmatpush1.xpose.msra.mxu0 0.0
    %1342 = vmatprep.subr.mxu0 0.0
    %1343 = vmatpush1.xpose.msra.mxu0 0.0
    %1344 = vmatprep.subr.mxu0 0.0
    %1345 = vmatpush1.xpose.msra.mxu0 0.0
    %1346 = vmatprep.subr.mxu0 0.0
    %1347 = vmatpush1.xpose.msra.mxu0 0.0
    %1348 = vmatprep.subr.mxu0 0.0
    %1349 = vmatpush1.xpose.msra.mxu0 0.0
    %1350 = vmatprep.subr.mxu0 0.0
    %1351 = vmatpush1.xpose.msra.mxu0 0.0
    %1352 = vmatprep.subr.mxu0 0.0
    %1353 = vmatpush1.xpose.msra.mxu0 0.0
    %1354 = vmatprep.subr.mxu0 0.0
    %1355 = vmatpush1.xpose.msra.mxu0 0.0
    %1356 = vmatprep.subr.mxu0 0.0
    %1357 = vmatpush1.xpose.msra.mxu0 0.0
    %1358 = vmatprep.subr.mxu0 0.0
    %1359 = vmatpush1.xpose.msra.mxu0 0.0
    %1360 = vmatprep.subr.mxu0 0.0
    %1361 = vmatpush1.xpose.msra.mxu0 0.0
    %1362 = vmatprep.subr.mxu0 0.0
    %1363 = vmatpush1.xpose.msra.mxu0 0.0
    %1364 = vmatprep.subr.mxu0 0.0
    %1365 = vmatpush1.xpose.msra.mxu0 0.0
    %1366 = vmatprep.subr.mxu0 0.0
    %1367 = vmatpush1.xpose.msra.mxu0 0.0
    %1368 = vmatprep.subr.mxu0 0.0
    %1369 = vmatpush1.xpose.msra.mxu0 0.0
    %1370 = vmatprep.subr.mxu0 0.0
    %1371 = vmatpush1.xpose.msra.mxu0 0.0
    %1372 = vmatprep.subr.mxu0 0.0
    %1373 = vmatpush1.xpose.msra.mxu0 0.0
    %1374 = vmatprep.subr.mxu0 0.0
    %1375 = vmatpush1.xpose.msra.mxu0 0.0
    %1376 = vmatprep.subr.mxu0 0.0
    %1377 = vmatpush1.xpose.msra.mxu0 0.0
    %1378 = vmatprep.subr.mxu0 0.0
    %1379 = vmatpush1.xpose.msra.mxu0 0.0
    %1380 = vmatprep.subr.mxu0 0.0
    %1381 = vmatpush1.xpose.msra.mxu0 0.0
    %1382 = vmatprep.subr.mxu0 0.0
    %1383 = vmatpush1.xpose.msra.mxu0 0.0
    %1384 = vmatprep.subr.mxu0 0.0
    %1385 = vmatpush1.xpose.msra.mxu0 0.0
    %1386 = vmatprep.subr.mxu0 0.0
    %1387 = vmatpush1.xpose.msra.mxu0 0.0
    %1388 = vmatprep.mubr.f32.mxu0 0.0
    %1389 = vmatmul.mubr.f32.gmra.mrb[0].mxu0 %v1311
    %v1390 = vpop.f32.mrb[0].mxu0
    %v1391 = vadd.f32 %v1307, %v1390
    %v1392 = vpop.f32.mrb[0].mxu0
    %1393 = vmatprep.mubr.f32.mxu0 0.0
    %1394 = vmatmul.mubr.f32.gmra.mrb[0].mxu0 %v1314
    %v1395 = vpop.f32.mrb[0].mxu0
    %v1396 = vadd.f32 %v1307, %v1395
    %v1397 = vpop.f32.mrb[0].mxu0
    %1398 = vdwg.mxu0
    %v1399 = vadd.f32 %v1166, %v1391
    %v1400 = vadd.f32 %v1167, %v1396
    %v1401 = vsel %vm93, %v1399, %v210
    %v1402 = vsel %vm93, %v1400, %v215
    %vm1403 = vcmask 785408
    %1404 = vst.msk [vmem:[#allocation10] sm:$0xff] %vm1403, %v1401
    %1405 = vst.msk [vmem:[#allocation10 + $0x8] sm:$0xff] %vm1403, %v1402
    // Predicated region
    $region42: #{tpu_custom_call.1} parent=1 // pred_check
      _
    $region43: #{tpu_custom_call.1} parent=1 // pred_check_branch
      %1407 = sbr.rel (0) target = $region45
    $region44: #{tpu_custom_call.1} parent=1 // pred_region
      %s1409 = ssub.s32 256, 256
      %1410 = vsyncadd [#allocation4], %s1409
      %s1411 = sshll.u32 [#allocation10], 4
      %s1412 = int_to_ptr.vmem [resolvable:$true] %s1411
      %1417 = dma.vmem_to_hbm [thread:$0]  %s1412, 256, %s6, [#allocation4], 128, 128, 8
    $region45: #{tpu_custom_call.1} parent=1 // pred_fallthru
      _
    // Predicated region
    $region46: #{tpu_custom_call.1} parent=1 // pred_check
      _
    $region47: #{tpu_custom_call.1} parent=1 // pred_check_branch
      %1419 = sbr.rel (0) target = $region49
    $region48: #{tpu_custom_call.1} parent=1 // pred_region
      %1420 = dma.done [#allocation4], 256
    $region49: #{tpu_custom_call.1} parent=1 // pred_fallthru
      _
    %1421 = vsyncpa [#allocation3], 1
    %1422 = vsyncpa [#allocation6], 1
    %1423 = vsyncpa [#allocation9], 1
    %1424 = vsyncpa [#allocation4], 1

</llo_original>
